<compile_context>
chip_gen: v7x
topology: tpu7x:2x2x1
jax: 0.10.0
libtpu: 0.0.40
codegen_flags: <defaults>
</compile_context>

<pallas_src>
import jax
import jax.numpy as jnp
from jax import lax
from jax.experimental import pallas as pl
from jax.experimental.pallas import tpu as pltpu


def basic_edge_kernel(x_ref, w1_ref, b1_ref, w2_ref, b2_ref, out_ref, pad_ref):
    # x_ref / out_ref block: (1, H, W, C) f32
    # w1_ref: (C, C) bf16 (BN1 scale folded in), b1_ref: (1, C) f32
    # w2_ref: (9*C, C) bf16 (BN2 scale folded in), b2_ref: (1, C) f32
    # pad_ref scratch: (H+2, W+2, C) f32, zero border, persists across grid
    _, H, W, C = x_ref.shape

    # Zero the padded scratch only once: the interior is fully overwritten
    # every grid step and the 1-wide border is never written afterwards.
    @pl.when(pl.program_id(0) == 0)
    def _():
        pad_ref[...] = jnp.zeros_like(pad_ref)

    x = x_ref[0]                               # (H, W, C) f32 (exact residual)
    x2d = x.reshape(H * W, C)

    # ---- conv1 (1x1, BN1 folded) + bias + relu: one bf16 MXU matmul ----
    y1 = jnp.dot(x2d.astype(jnp.bfloat16), w1_ref[...],
                 preferred_element_type=jnp.float32)
    y1 = jnp.maximum(y1 + b1_ref[...], 0.0)    # (H*W, C) f32

    # ---- stage y1 into the zero-padded scratch (spatial padding = 1) ----
    pad_ref[1:H + 1, 1:W + 1, :] = y1.reshape(H, W, C)

    # ---- im2col: 9 shifted taps concatenated on the lane (channel) axis ----
    # H offsets (kh) are free major-dim address offsets; W offsets (kw=0,2)
    # cost a small sublane relayout (could be a pltpu.roll + mask instead).
    taps = []
    for kh in range(3):
        for kw in range(3):
            taps.append(pad_ref[kh:kh + H, kw:kw + W, :].astype(jnp.bfloat16))
    im2col = jnp.concatenate(taps, axis=-1).reshape(H * W, 9 * C)

    # ---- conv2 (3x3, BN2 folded) as ONE MXU matmul with K = 9*C ----
    y2 = jnp.dot(im2col, w2_ref[...], preferred_element_type=jnp.float32)
    y2 = y2 + b2_ref[...]

    # ---- residual add + relu (f32 epilogue) ----
    out = jnp.maximum(y2 + x2d, 0.0)
    out_ref[0] = out.reshape(H, W, C).astype(out_ref.dtype)


def basic_edge_pallas(x_nhwc, w1_bf, b1_row, w2_mat_bf, b2_row):
    """x_nhwc: (N,H,W,C) f32; w1_bf: (C,C) bf16; w2_mat_bf: (9C,C) bf16;
    b*_row: (1,C) f32.  Returns (N,H,W,C) f32."""
    N, H, W, C = x_nhwc.shape
    # Keep the (H, W, C) <-> (H*W, C) reshapes copy-free on the (8,128) tiling.
    assert W % 8 == 0, "W must be a multiple of 8"
    return pl.pallas_call(
        basic_edge_kernel,
        out_shape=jax.ShapeDtypeStruct((N, H, W, C), x_nhwc.dtype),
        grid_spec=pltpu.PrefetchScalarGridSpec(
            num_scalar_prefetch=0,
            grid=(N,),
            in_specs=[
                pl.BlockSpec((1, H, W, C), lambda b: (b, 0, 0, 0)),   # x
                pl.BlockSpec((C, C), lambda b: (0, 0)),               # w1
                pl.BlockSpec((1, C), lambda b: (0, 0)),               # b1
                pl.BlockSpec((9 * C, C), lambda b: (0, 0)),           # w2 (im2col)
                pl.BlockSpec((1, C), lambda b: (0, 0)),               # b2
            ],
            out_specs=pl.BlockSpec((1, H, W, C), lambda b: (b, 0, 0, 0)),
            scratch_shapes=[pltpu.VMEM((H + 2, W + 2, C), jnp.float32)],
        ),
        compiler_params=pltpu.CompilerParams(
            dimension_semantics=("parallel",)),
    )(x_nhwc, w1_bf, b1_row, w2_mat_bf, b2_row)


def fold_bn_into_conv(w, gamma, beta, running_mean, running_var, eps=1e-5):
    """Fold inference-mode BN into the conv weight's output-channel axis."""
    scale = gamma / jnp.sqrt(running_var + eps)
    bias = beta - running_mean * scale
    return w * scale, bias          # scale broadcasts over the last (Cout) axis


def reference_nhwc(x, w1_bf, b1, w2_hwio_bf, b2):
    """Pure-JAX reference using the same folded bf16 weights / f32 accumulation."""
    C = w1_bf.shape[0]
    xb = x.astype(jnp.bfloat16)
    w1_hwio = w1_bf.reshape(1, 1, C, C)
    dn1 = lax.conv_dimension_numbers(x.shape, w1_hwio.shape,
                                     ("NHWC", "HWIO", "NHWC"))
    y = lax.conv_general_dilated(xb, w1_hwio, (1, 1), "VALID",
                                 dimension_numbers=dn1,
                                 preferred_element_type=jnp.float32)
    y = jnp.maximum(y + b1.reshape(1, 1, 1, -1), 0.0)
    dn2 = lax.conv_dimension_numbers(y.shape, w2_hwio_bf.shape,
                                     ("NHWC", "HWIO", "NHWC"))
    y2 = lax.conv_general_dilated(y.astype(jnp.bfloat16), w2_hwio_bf, (1, 1),
                                  ((1, 1), (1, 1)), dimension_numbers=dn2,
                                  preferred_element_type=jnp.float32)
    y2 = y2 + b2.reshape(1, 1, 1, -1)
    return jnp.maximum(y2 + x, 0.0)


if __name__ == "__main__":
    # input_channels == output_channels == C (BasicEdge precondition).
    # C = 128 keeps the lane axis fully occupied (lane-dense output stores).
    N, C, H, W = 2, 128, 16, 16

    key = jax.random.PRNGKey(0)
    kx, k1, k2 = jax.random.split(key, 3)

    # Input in PyTorch NCHW convention, moved to kernel layout NHWC.
    x_nchw = jax.random.normal(kx, (N, C, H, W), dtype=jnp.float32)
    x_nhwc = jnp.transpose(x_nchw, (0, 2, 3, 1))

    # conv1 weight: PyTorch (Cout, Cin, 1, 1) -> (Cin, Cout)
    w1_pt = jax.random.normal(k1, (C, C, 1, 1), dtype=jnp.float32) * 0.1
    w1_io = jnp.transpose(w1_pt[:, :, 0, 0], (1, 0))

    # conv2 weight: PyTorch (Cout, Cin, 3, 3) -> HWIO (kh, kw, Cin, Cout)
    w2_pt = jax.random.normal(k2, (C, C, 3, 3), dtype=jnp.float32) * 0.05
    w2_hwio = jnp.transpose(w2_pt, (2, 3, 1, 0))

    # Deterministic BatchNorm parameters (inference mode).
    ar = jnp.arange(C, dtype=jnp.float32) / C
    g1, be1, rm1, rv1 = 1.0 + 0.1 * ar, 0.05 * ar, 0.01 * ar, 1.0 + 0.02 * ar
    g2, be2, rm2, rv2 = 1.0 - 0.05 * ar, -0.02 * ar, 0.03 * ar, 1.0 + 0.01 * ar

    # Fold BN scale into the conv weights; keep only the bias adds in-kernel.
    w1_f, b1 = fold_bn_into_conv(w1_io, g1, be1, rm1, rv1)
    w2_f, b2 = fold_bn_into_conv(w2_hwio, g2, be2, rm2, rv2)

    # bf16 MXU operands (f32 accumulation happens inside the kernel).
    w1_bf = w1_f.astype(jnp.bfloat16)                            # (C, C)
    w2_mat_bf = w2_f.reshape(9 * C, C).astype(jnp.bfloat16)      # (9C, C)
    b1_row = b1.reshape(1, C).astype(jnp.float32)
    b2_row = b2.reshape(1, C).astype(jnp.float32)

    out_nhwc = basic_edge_pallas(x_nhwc, w1_bf, b1_row, w2_mat_bf, b2_row)
    out_nhwc = jax.block_until_ready(out_nhwc)

    ref = reference_nhwc(x_nhwc, w1_bf, b1, w2_f.astype(jnp.bfloat16), b2)
    ref = jax.block_until_ready(ref)
    assert jnp.allclose(out_nhwc, ref, atol=2e-2, rtol=2e-2), "mismatch vs ref"

    # Back to PyTorch NCHW convention for the final output.
    out_nchw = jnp.transpose(out_nhwc, (0, 3, 1, 2))
    jax.block_until_ready(out_nchw)
    print("KERNEL_OK")
</pallas_src>

<mosaic_0001>
module attributes {stable_mosaic.version = 11 : i64} {
  func.func @basic_edge_kernel(%arg0: i32, %arg1: memref<1x16x16x128xf32, #tpu.memory_space<vmem>>, %arg2: memref<128x128xbf16, #tpu.memory_space<vmem>>, %arg3: memref<1x128xf32, #tpu.memory_space<vmem>>, %arg4: memref<1152x128xbf16, #tpu.memory_space<vmem>>, %arg5: memref<1x128xf32, #tpu.memory_space<vmem>>, %arg6: memref<1x16x16x128xf32, #tpu.memory_space<vmem>>, %arg7: memref<18x18x128xf32, #tpu.memory_space<vmem>>) attributes {dimension_semantics = [#tpu.dimension_semantics<parallel>], iteration_bounds = array<i64: 2>, scalar_prefetch = 0 : i64, scratch_operands = 1 : i64, tpu.core_type = #tpu.core_type<tc>, window_params = [{transform_indices = @transform_0, window_bounds = array<i64: 1, 16, 16, 128>}, {pipeline_mode = #tpu.pipeline_mode<synchronous>, transform_indices = @transform_1, window_bounds = array<i64: 128, 128>}, {pipeline_mode = #tpu.pipeline_mode<synchronous>, transform_indices = @transform_2, window_bounds = array<i64: 1, 128>}, {pipeline_mode = #tpu.pipeline_mode<synchronous>, transform_indices = @transform_3, window_bounds = array<i64: 1152, 128>}, {pipeline_mode = #tpu.pipeline_mode<synchronous>, transform_indices = @transform_4, window_bounds = array<i64: 1, 128>}, {transform_indices = @transform_5, window_bounds = array<i64: 1, 16, 16, 128>}]} {
    %c0_i32 = arith.constant 0 : i32
    %0 = arith.cmpi eq, %arg0, %c0_i32 : i32
    %1 = arith.extui %0 : i1 to i32
    %c0_i32_0 = arith.constant 0 : i32
    %2 = arith.cmpi ne, %1, %c0_i32_0 : i32
    scf.if %2 {
      %cst_47 = arith.constant 0.000000e+00 : f32
      %48 = vector.broadcast %cst_47 : f32 to vector<18x18x128xf32>
      %c0_48 = arith.constant 0 : index
      %c0_49 = arith.constant 0 : index
      %c0_50 = arith.constant 0 : index
      %49 = vector.load %arg7[%c0_48, %c0_49, %c0_50] : memref<18x18x128xf32, #tpu.memory_space<vmem>>, vector<18x18x128xf32>
      tpu.vector_store %arg7[%c0_48, %c0_49, %c0_50], %48 {strides = array<i32>} : memref<18x18x128xf32, #tpu.memory_space<vmem>>, vector<18x18x128xf32>,
    } else {
    }
    %c0 = arith.constant 0 : index
    %c0_1 = arith.constant 0 : index
    %c0_2 = arith.constant 0 : index
    %c0_3 = arith.constant 0 : index
    %3 = vector.load %arg1[%c0, %c0_1, %c0_2, %c0_3] : memref<1x16x16x128xf32, #tpu.memory_space<vmem>>, vector<1x16x16x128xf32>
    %4 = vector.shape_cast %3 : vector<1x16x16x128xf32> to vector<16x16x128xf32>
    %5 = vector.shape_cast %4 : vector<16x16x128xf32> to vector<256x128xf32>
    %6 = arith.truncf %5 : vector<256x128xf32> to vector<256x128xbf16>
    %c0_4 = arith.constant 0 : index
    %c0_5 = arith.constant 0 : index
    %7 = vector.load %arg2[%c0_4, %c0_5] : memref<128x128xbf16, #tpu.memory_space<vmem>>, vector<128x128xbf16>
    %cst = arith.constant dense<0.000000e+00> : vector<256x128xf32>
    %8 = tpu.matmul %6, %7, %cst {dimension_numbers = #tpu.dot_dimension_numbers<[1], [0], [0], [1], [0, 0, 1, 1], [], []>} : vector<256x128xbf16>, vector<128x128xbf16>, vector<256x128xf32> -> vector<256x128xf32>
    %c0_6 = arith.constant 0 : index
    %c0_7 = arith.constant 0 : index
    %9 = vector.load %arg3[%c0_6, %c0_7] : memref<1x128xf32, #tpu.memory_space<vmem>>, vector<1x128xf32>
    %10 = vector.broadcast %9 : vector<1x128xf32> to vector<256x128xf32>
    %11 = arith.addf %8, %10 : vector<256x128xf32>
    %cst_8 = arith.constant 0.000000e+00 : f32
    %12 = vector.broadcast %cst_8 : f32 to vector<256x128xf32>
    %13 = arith.maximumf %11, %12 : vector<256x128xf32>
    %14 = vector.shape_cast %13 : vector<256x128xf32> to vector<16x16x128xf32>
    %c1 = arith.constant 1 : index
    %c1_9 = arith.constant 1 : index
    %c0_10 = arith.constant 0 : index
    %15 = vector.load %arg7[%c1, %c1_9, %c0_10] : memref<18x18x128xf32, #tpu.memory_space<vmem>>, vector<16x16x128xf32>
    tpu.vector_store %arg7[%c1, %c1_9, %c0_10], %14 {strides = array<i32>} : memref<18x18x128xf32, #tpu.memory_space<vmem>>, vector<16x16x128xf32>,
    %c0_11 = arith.constant 0 : index
    %c0_12 = arith.constant 0 : index
    %c0_13 = arith.constant 0 : index
    %16 = vector.load %arg7[%c0_11, %c0_12, %c0_13] : memref<18x18x128xf32, #tpu.memory_space<vmem>>, vector<16x16x128xf32>
    %17 = arith.truncf %16 : vector<16x16x128xf32> to vector<16x16x128xbf16>
    %c0_14 = arith.constant 0 : index
    %c1_15 = arith.constant 1 : index
    %c0_16 = arith.constant 0 : index
    %18 = vector.load %arg7[%c0_14, %c1_15, %c0_16] : memref<18x18x128xf32, #tpu.memory_space<vmem>>, vector<16x16x128xf32>
    %19 = arith.truncf %18 : vector<16x16x128xf32> to vector<16x16x128xbf16>
    %c0_17 = arith.constant 0 : index
    %c2 = arith.constant 2 : index
    %c0_18 = arith.constant 0 : index
    %20 = vector.load %arg7[%c0_17, %c2, %c0_18] : memref<18x18x128xf32, #tpu.memory_space<vmem>>, vector<16x16x128xf32>
    %21 = arith.truncf %20 : vector<16x16x128xf32> to vector<16x16x128xbf16>
    %c1_19 = arith.constant 1 : index
    %c0_20 = arith.constant 0 : index
    %c0_21 = arith.constant 0 : index
    %22 = vector.load %arg7[%c1_19, %c0_20, %c0_21] : memref<18x18x128xf32, #tpu.memory_space<vmem>>, vector<16x16x128xf32>
    %23 = arith.truncf %22 : vector<16x16x128xf32> to vector<16x16x128xbf16>
    %c1_22 = arith.constant 1 : index
    %c1_23 = arith.constant 1 : index
    %c0_24 = arith.constant 0 : index
    %24 = vector.load %arg7[%c1_22, %c1_23, %c0_24] : memref<18x18x128xf32, #tpu.memory_space<vmem>>, vector<16x16x128xf32>
    %25 = arith.truncf %24 : vector<16x16x128xf32> to vector<16x16x128xbf16>
    %c1_25 = arith.constant 1 : index
    %c2_26 = arith.constant 2 : index
    %c0_27 = arith.constant 0 : index
    %26 = vector.load %arg7[%c1_25, %c2_26, %c0_27] : memref<18x18x128xf32, #tpu.memory_space<vmem>>, vector<16x16x128xf32>
    %27 = arith.truncf %26 : vector<16x16x128xf32> to vector<16x16x128xbf16>
    %c2_28 = arith.constant 2 : index
    %c0_29 = arith.constant 0 : index
    %c0_30 = arith.constant 0 : index
    %28 = vector.load %arg7[%c2_28, %c0_29, %c0_30] : memref<18x18x128xf32, #tpu.memory_space<vmem>>, vector<16x16x128xf32>
    %29 = arith.truncf %28 : vector<16x16x128xf32> to vector<16x16x128xbf16>
    %c2_31 = arith.constant 2 : index
    %c1_32 = arith.constant 1 : index
    %c0_33 = arith.constant 0 : index
    %30 = vector.load %arg7[%c2_31, %c1_32, %c0_33] : memref<18x18x128xf32, #tpu.memory_space<vmem>>, vector<16x16x128xf32>
    %31 = arith.truncf %30 : vector<16x16x128xf32> to vector<16x16x128xbf16>
    %c2_34 = arith.constant 2 : index
    %c2_35 = arith.constant 2 : index
    %c0_36 = arith.constant 0 : index
    %32 = vector.load %arg7[%c2_34, %c2_35, %c0_36] : memref<18x18x128xf32, #tpu.memory_space<vmem>>, vector<16x16x128xf32>
    %33 = arith.truncf %32 : vector<16x16x128xf32> to vector<16x16x128xbf16>
    %34 = tpu.concatenate %17, %19, %21, %23, %25, %27, %29, %31, %33 in 2 : vector<16x16x128xbf16>, vector<16x16x128xbf16>, vector<16x16x128xbf16>, vector<16x16x128xbf16>, vector<16x16x128xbf16>, vector<16x16x128xbf16>, vector<16x16x128xbf16>, vector<16x16x128xbf16>, vector<16x16x128xbf16> -> vector<16x16x1152xbf16>
    %35 = vector.shape_cast %34 : vector<16x16x1152xbf16> to vector<256x1152xbf16>
    %c0_37 = arith.constant 0 : index
    %c0_38 = arith.constant 0 : index
    %36 = vector.load %arg4[%c0_37, %c0_38] : memref<1152x128xbf16, #tpu.memory_space<vmem>>, vector<1152x128xbf16>
    %cst_39 = arith.constant dense<0.000000e+00> : vector<256x128xf32>
    %37 = tpu.matmul %35, %36, %cst_39 {dimension_numbers = #tpu.dot_dimension_numbers<[1], [0], [0], [1], [0, 0, 1, 1], [], []>} : vector<256x1152xbf16>, vector<1152x128xbf16>, vector<256x128xf32> -> vector<256x128xf32>
    %c0_40 = arith.constant 0 : index
    %c0_41 = arith.constant 0 : index
    %38 = vector.load %arg5[%c0_40, %c0_41] : memref<1x128xf32, #tpu.memory_space<vmem>>, vector<1x128xf32>
    %39 = vector.broadcast %38 : vector<1x128xf32> to vector<256x128xf32>
    %40 = arith.addf %37, %39 : vector<256x128xf32>
    %41 = arith.addf %40, %5 : vector<256x128xf32>
    %cst_42 = arith.constant 0.000000e+00 : f32
    %42 = vector.broadcast %cst_42 : f32 to vector<256x128xf32>
    %43 = arith.maximumf %41, %42 : vector<256x128xf32>
    %44 = vector.shape_cast %43 : vector<256x128xf32> to vector<16x16x128xf32>
    %c0_43 = arith.constant 0 : index
    %c0_44 = arith.constant 0 : index
    %c0_45 = arith.constant 0 : index
    %c0_46 = arith.constant 0 : index
    %45 = vector.load %arg6[%c0_43, %c0_44, %c0_45, %c0_46] : memref<1x16x16x128xf32, #tpu.memory_space<vmem>>, vector<1x16x16x128xf32>
    %46 = vector.shape_cast %45 : vector<1x16x16x128xf32> to vector<16x16x128xf32>
    %47 = vector.shape_cast %44 : vector<16x16x128xf32> to vector<1x16x16x128xf32>
    tpu.vector_store %arg6[%c0_43, %c0_44, %c0_45, %c0_46], %47 {strides = array<i32>} : memref<1x16x16x128xf32, #tpu.memory_space<vmem>>, vector<1x16x16x128xf32>,
    return
  }
  func.func @transform_0(%arg0: i32) -> (i32, i32, i32, i32) {
    %c0_i32 = arith.constant 0 : i32
    %c0_i32_0 = arith.constant 0 : i32
    %c0_i32_1 = arith.constant 0 : i32
    %c0_i32_2 = arith.constant 0 : i32
    return %arg0, %c0_i32, %c0_i32_0, %c0_i32_1 : i32, i32, i32, i32
  }
  func.func @transform_1(%arg0: i32) -> (i32, i32) {
    %c0_i32 = arith.constant 0 : i32
    %c0_i32_0 = arith.constant 0 : i32
    %c0_i32_1 = arith.constant 0 : i32
    return %c0_i32, %c0_i32_0 : i32, i32
  }
  func.func @transform_2(%arg0: i32) -> (i32, i32) {
    %c0_i32 = arith.constant 0 : i32
    %c0_i32_0 = arith.constant 0 : i32
    %c0_i32_1 = arith.constant 0 : i32
    return %c0_i32, %c0_i32_0 : i32, i32
  }
  func.func @transform_3(%arg0: i32) -> (i32, i32) {
    %c0_i32 = arith.constant 0 : i32
    %c0_i32_0 = arith.constant 0 : i32
    %c0_i32_1 = arith.constant 0 : i32
    return %c0_i32, %c0_i32_0 : i32, i32
  }
  func.func @transform_4(%arg0: i32) -> (i32, i32) {
    %c0_i32 = arith.constant 0 : i32
    %c0_i32_0 = arith.constant 0 : i32
    %c0_i32_1 = arith.constant 0 : i32
    return %c0_i32, %c0_i32_0 : i32, i32
  }
  func.func @transform_5(%arg0: i32) -> (i32, i32, i32, i32) {
    %c0_i32 = arith.constant 0 : i32
    %c0_i32_0 = arith.constant 0 : i32
    %c0_i32_1 = arith.constant 0 : i32
    %c0_i32_2 = arith.constant 0 : i32
    return %arg0, %c0_i32, %c0_i32_0, %c0_i32_1 : i32, i32, i32, i32
  }
}

</mosaic_0001>

<llo_original>
// kernel: tpu_custom_call.1
$region0: #{tpu_custom_call.1}
  #allocation0 [shape = 'u32[]', space=smem, size = 0x4, offset = 0x4, fixed_abs, tag = 'smem constant byte address 0x4 - core index']
  #allocation1 [shape = 'u32[144,128]{1,0:T(1,128)}', space=vmem, size = 0x12000, scoped, tag = 'internal scratch']
  #allocation2 [shape = 'f32[18,18,128]{2,1,0:T(8,128)}', space=vmem, size = 0x36000, scoped, tag = 'scratch operand']
  %s0 = inlined_call_operand.hbm [shape: f32[2,16,16,128], index: 0, kind: input, shape index: {}]
  %s1 = inlined_call_operand.hbm [shape: bf16[128,128], index: 1, kind: input, shape index: {}]
  %s2 = inlined_call_operand.vmem [shape: f32[1,128], index: 2, kind: input, shape index: {}]
  %s3 = inlined_call_operand.hbm [shape: bf16[1152,128], index: 3, kind: input, shape index: {}]
  %s4 = inlined_call_operand.vmem [shape: f32[1,128], index: 4, kind: input, shape index: {}]
  %s5 = inlined_call_operand.hbm [shape: f32[2,16,16,128], index: 5, kind: output, shape index: {}]
  %s6 = sld [smem:[#allocation0]]
  $region69: #{tpu_custom_call.1} parent=0
    _
  %s8 = ssub.s32 1, %s6
  %s9 = scalar_select 0, %s8, %s6
  $region1: #{tpu_custom_call.1} parent=0
    #allocation3 [shape = 'u8[262144]{0}', space=vmem, size = 0x40000, scoped, tag = 'input window, operand 0']
    #allocation4 [shape = 's32[2]{0}', space=sflag, size = 0x8, scoped, tag = 'scoped memory for tpu_custom_call.1']
    #allocation5 [shape = 's32[2]{0}', space=sflag, size = 0x8, scoped, tag = 'scoped memory for tpu_custom_call.1']
    #allocation6 [shape = 'u8[32768]{0}', space=vmem, size = 0x8000, scoped, tag = 'input window, operand 1, single buffered']
    #allocation7 [shape = 's32[1]{0}', space=sflag, size = 0x4, scoped, tag = 'scoped memory for tpu_custom_call.1']
    #allocation8 [shape = 'u8[294912]{0}', space=vmem, size = 0x48000, scoped, tag = 'input window, operand 3, single buffered']
    #allocation9 [shape = 'u8[262144]{0}', space=vmem, size = 0x40000, scoped, tag = 'output window, operand 0']
    %10 = vsyncpa [#allocation4], 0
    %s11 = scalar_lea.sflag [#allocation4], 1
    %12 = vsyncpa %s11, 0
    %13 = vsyncpa [#allocation7], 0
    %14 = vsyncpa [#allocation5], 0
    %s15 = scalar_lea.sflag [#allocation5], 1
    %16 = vsyncpa %s15, 0
    loop: start=0, step=1, limit=4
    $region2: #{tpu_custom_call.1} parent=1 // loop_pre_header
      _
    $region3: #{tpu_custom_call.1} parent=1 // loop_header
      %s18 = sphi 0, %s22
      %p19 = scmp.ge.s32.totalorder %s18, 4
      %s28 = sphi 0, %s30
      %s31 = sphi 0, %s28
      %s32 = sphi 0, %s31
      %s48 = sphi 0, %s32
      %s52 = sphi 0, %s52
      %s54 = sphi 0, %s52
      %s55 = sphi 0, %s54
      %s69 = sphi 0, %s55
      %s73 = sphi 0, %s73
      %s75 = sphi 0, %s73
      %s76 = sphi 0, %s75
      %s90 = sphi 0, %s76
      %s94 = sphi 0, %s94
      %s96 = sphi 0, %s94
      %s97 = sphi 0, %s96
      %s111 = sphi 0, %s97
      %s115 = sphi 0, %s115
      %s117 = sphi 0, %s115
      %s118 = sphi 0, %s117
      %s132 = sphi 0, %s118
      %s138 = sphi 0, %s140
      %s141 = sphi 0, %s138
      %s142 = sphi 0, %s141
      %s158 = sphi 0, %s142
    $region4: #{tpu_custom_call.1} parent=1 // loop_header_branch
      %21 = sbr.rel (%p19) target = $region8
    $region5: #{tpu_custom_call.1} parent=1 // loop_body
      %s23 = ssub.s32 %s18, 1
      %s24 = ssub.s32 %s18, 2
      %s25 = sadd.s32 %s18, 1
      %s26 = ssub.s32 %s18, %s25
      %p27 = scmp.eq.s32.totalorder %s26, 0
      %s29 = sadd.s32 %s28, 1
      %s30 = scalar_select %p27, %s28, %s29
      %p33 = pneg %p27
      %p34 = scmp.eq.s32.totalorder %s18, 1
      %p35 = por %p33, %p34
      %p36 = scmp.ne.s32.totalorder %s28, %s31
      %p37 = scmp.eq.s32.totalorder %s18, 0
      %p38 = por %p36, %p37
      %p39 = scmp.ne.s32.totalorder %s28, %s31
      %p40 = scmp.eq.s32.totalorder %s23, 1
      %p41 = por %p39, %p40
      %p42 = scmp.ne.s32.totalorder %s31, %s32
      %p43 = scmp.eq.s32.totalorder %s23, 0
      %p44 = por %p42, %p43
      %p45 = scmp.ne.s32.totalorder %s31, %s32
      %p46 = scmp.eq.s32.totalorder %s24, 1
      %p47 = por %p45, %p46
      %p49 = scmp.ne.s32.totalorder %s32, %s48
      %p50 = scmp.eq.s32.totalorder %s24, 0
      %p51 = por %p49, %p50
      %s53 = sadd.s32 %s52, 1
      %p56 = scmp.eq.s32.totalorder %s18, 1
      %p57 = scmp.ne.s32.totalorder %s52, %s54
      %p58 = scmp.eq.s32.totalorder %s18, 0
      %p59 = por %p57, %p58
      %p60 = scmp.ne.s32.totalorder %s52, %s54
      %p61 = scmp.eq.s32.totalorder %s23, 1
      %p62 = por %p60, %p61
      %p63 = scmp.ne.s32.totalorder %s54, %s55
      %p64 = scmp.eq.s32.totalorder %s23, 0
      %p65 = por %p63, %p64
      %p66 = scmp.ne.s32.totalorder %s54, %s55
      %p67 = scmp.eq.s32.totalorder %s24, 1
      %p68 = por %p66, %p67
      %p70 = scmp.ne.s32.totalorder %s55, %s69
      %p71 = scmp.eq.s32.totalorder %s24, 0
      %p72 = por %p70, %p71
      %s74 = sadd.s32 %s73, 1
      %p77 = scmp.eq.s32.totalorder %s18, 1
      %p78 = scmp.ne.s32.totalorder %s73, %s75
      %p79 = scmp.eq.s32.totalorder %s18, 0
      %p80 = por %p78, %p79
      %p81 = scmp.ne.s32.totalorder %s73, %s75
      %p82 = scmp.eq.s32.totalorder %s23, 1
      %p83 = por %p81, %p82
      %p84 = scmp.ne.s32.totalorder %s75, %s76
      %p85 = scmp.eq.s32.totalorder %s23, 0
      %p86 = por %p84, %p85
      %p87 = scmp.ne.s32.totalorder %s75, %s76
      %p88 = scmp.eq.s32.totalorder %s24, 1
      %p89 = por %p87, %p88
      %p91 = scmp.ne.s32.totalorder %s76, %s90
      %p92 = scmp.eq.s32.totalorder %s24, 0
      %p93 = por %p91, %p92
      %s95 = sadd.s32 %s94, 1
      %p98 = scmp.eq.s32.totalorder %s18, 1
      %p99 = scmp.ne.s32.totalorder %s94, %s96
      %p100 = scmp.eq.s32.totalorder %s18, 0
      %p101 = por %p99, %p100
      %p102 = scmp.ne.s32.totalorder %s94, %s96
      %p103 = scmp.eq.s32.totalorder %s23, 1
      %p104 = por %p102, %p103
      %p105 = scmp.ne.s32.totalorder %s96, %s97
      %p106 = scmp.eq.s32.totalorder %s23, 0
      %p107 = por %p105, %p106
      %p108 = scmp.ne.s32.totalorder %s96, %s97
      %p109 = scmp.eq.s32.totalorder %s24, 1
      %p110 = por %p108, %p109
      %p112 = scmp.ne.s32.totalorder %s97, %s111
      %p113 = scmp.eq.s32.totalorder %s24, 0
      %p114 = por %p112, %p113
      %s116 = sadd.s32 %s115, 1
      %p119 = scmp.eq.s32.totalorder %s18, 1
      %p120 = scmp.ne.s32.totalorder %s115, %s117
      %p121 = scmp.eq.s32.totalorder %s18, 0
      %p122 = por %p120, %p121
      %p123 = scmp.ne.s32.totalorder %s115, %s117
      %p124 = scmp.eq.s32.totalorder %s23, 1
      %p125 = por %p123, %p124
      %p126 = scmp.ne.s32.totalorder %s117, %s118
      %p127 = scmp.eq.s32.totalorder %s23, 0
      %p128 = por %p126, %p127
      %p129 = scmp.ne.s32.totalorder %s117, %s118
      %p130 = scmp.eq.s32.totalorder %s24, 1
      %p131 = por %p129, %p130
      %p133 = scmp.ne.s32.totalorder %s118, %s132
      %p134 = scmp.eq.s32.totalorder %s24, 0
      %p135 = por %p133, %p134
      %s136 = ssub.s32 %s18, %s25
      %p137 = scmp.eq.s32.totalorder %s136, 0
      %s139 = sadd.s32 %s138, 1
      %s140 = scalar_select %p137, %s138, %s139
      %p143 = pneg %p137
      %p144 = scmp.eq.s32.totalorder %s18, 1
      %p145 = por %p143, %p144
      %p146 = scmp.ne.s32.totalorder %s138, %s141
      %p147 = scmp.eq.s32.totalorder %s18, 0
      %p148 = por %p146, %p147
      %p149 = scmp.ne.s32.totalorder %s138, %s141
      %p150 = scmp.eq.s32.totalorder %s23, 1
      %p151 = por %p149, %p150
      %p152 = scmp.ne.s32.totalorder %s141, %s142
      %p153 = scmp.eq.s32.totalorder %s23, 0
      %p154 = por %p152, %p153
      %p155 = scmp.ne.s32.totalorder %s141, %s142
      %p156 = scmp.eq.s32.totalorder %s24, 1
      %p157 = por %p155, %p156
      %p159 = scmp.ne.s32.totalorder %s142, %s158
      %p160 = scmp.eq.s32.totalorder %s24, 0
      %p161 = por %p159, %p160
      %p162 = scmp.le.s32.totalorder 1, %s18
      %p163 = scmp.lt.s32.totalorder %s18, 3
      %p164 = pnand %p162, %p163
      %p165 = pneg %p164
      // Predicated region
      $region9: #{tpu_custom_call.1} parent=5 // pred_check
        _
      $region10: #{tpu_custom_call.1} parent=5 // pred_check_branch
        %167 = sbr.rel (%p164) target = $region12
      $region11: #{tpu_custom_call.1} parent=5 // pred_region
        %s168 = ssub.s32 %s18, 1
        // Predicated region
        $region13: #{tpu_custom_call.1} parent=11 // pred_check
          %p169 = pneg %p65
        $region14: #{tpu_custom_call.1} parent=11 // pred_check_branch
          %171 = sbr.rel (%p169) target = $region16
        $region15: #{tpu_custom_call.1} parent=11 // pred_region
          %s173 = ssub.s32 1024, 1024
          %174 = vsyncadd [#allocation7], %s173
          %s175 = sshll.u32 [#allocation6], 4
          %s176 = int_to_ptr.vmem [resolvable:$true] %s175
          %181 = dma.hbm_to_vmem [thread:$0]  %s1, 1024, %s176, [#allocation7], 64, 64, 4
        $region16: #{tpu_custom_call.1} parent=11 // pred_fallthru
          _
        // Predicated region
        $region17: #{tpu_custom_call.1} parent=11 // pred_check
          %p182 = pneg %p86
        $region18: #{tpu_custom_call.1} parent=11 // pred_check_branch
          %184 = sbr.rel (%p182) target = $region20
        $region19: #{tpu_custom_call.1} parent=11 // pred_region
          _
        $region20: #{tpu_custom_call.1} parent=11 // pred_fallthru
          _
        // Predicated region
        $region21: #{tpu_custom_call.1} parent=11 // pred_check
          %p185 = pneg %p107
        $region22: #{tpu_custom_call.1} parent=11 // pred_check_branch
          %187 = sbr.rel (%p185) target = $region24
        $region23: #{tpu_custom_call.1} parent=11 // pred_region
          %s189 = ssub.s32 9216, 9216
          %190 = vsyncadd [#allocation7], %s189
          %s191 = sshll.u32 [#allocation8], 4
          %s192 = int_to_ptr.vmem [resolvable:$true] %s191
          %197 = dma.hbm_to_vmem [thread:$0]  %s3, 9216, %s192, [#allocation7], 64, 64, 4
        $region24: #{tpu_custom_call.1} parent=11 // pred_fallthru
          _
        // Predicated region
        $region25: #{tpu_custom_call.1} parent=11 // pred_check
          %p198 = pneg %p128
        $region26: #{tpu_custom_call.1} parent=11 // pred_check_branch
          %200 = sbr.rel (%p198) target = $region28
        $region27: #{tpu_custom_call.1} parent=11 // pred_region
          _
        $region28: #{tpu_custom_call.1} parent=11 // pred_fallthru
          _
      $region12: #{tpu_custom_call.1} parent=5 // pred_fallthru
        _
      %p201 = scmp.lt.s32.totalorder %s18, 2
      // Predicated region
      $region29: #{tpu_custom_call.1} parent=5 // pred_check
        %p202 = pneg %p201
      $region30: #{tpu_custom_call.1} parent=5 // pred_check_branch
        %204 = sbr.rel (%p202) target = $region32
      $region31: #{tpu_custom_call.1} parent=5 // pred_region
        // Predicated region
        $region33: #{tpu_custom_call.1} parent=31 // pred_check
          %p205 = pneg %p38
        $region34: #{tpu_custom_call.1} parent=31 // pred_check_branch
          %207 = sbr.rel (%p205) target = $region36
        $region35: #{tpu_custom_call.1} parent=31 // pred_region
          %s208 = sand.u32 %s28, 1
          %s209 = scalar_lea.sflag [#allocation4], %s208
          %s210 = sand.u32 %s28, 1
          %s211 = smul.addr %s210, 256
          %s212 = scalar_lea.vmem [#allocation3], %s211
          %s214 = ssub.s32 4096, 4096
          %215 = vsyncadd %s209, %s214
          %s216 = smul.addr %s18, 32
          %s217 = smul.addr %s216, 128
          %s218 = scalar_lea.hbm %s0, %s217
          %s219 = sshll.u32 %s212, 4
          %s220 = int_to_ptr.vmem [resolvable:$true] %s219
          %225 = dma.hbm_to_vmem [thread:$0]  %s218, 4096, %s220, %s209, 128, 128, 8
        $region36: #{tpu_custom_call.1} parent=31 // pred_fallthru
          _
      $region32: #{tpu_custom_call.1} parent=5 // pred_fallthru
        _
      %p226 = scmp.le.s32.totalorder 1, %s18
      %p227 = scmp.lt.s32.totalorder %s18, 3
      %p228 = pnand %p226, %p227
      %p229 = pneg %p228
      // Predicated region
      $region37: #{tpu_custom_call.1} parent=5 // pred_check
        _
      $region38: #{tpu_custom_call.1} parent=5 // pred_check_branch
        %231 = sbr.rel (%p228) target = $region40
      $region39: #{tpu_custom_call.1} parent=5 // pred_region
        %s232 = ssub.s32 %s18, 1
        %s233 = sand.u32 %s31, 1
        %s234 = scalar_lea.sflag [#allocation4], %s233
        %s235 = sand.u32 %s31, 1
        %s236 = smul.addr %s235, 256
        %s237 = scalar_lea.vmem [#allocation3], %s236
        // Predicated region
        $region41: #{tpu_custom_call.1} parent=39 // pred_check
          %p238 = pneg %p44
        $region42: #{tpu_custom_call.1} parent=39 // pred_check_branch
          %240 = sbr.rel (%p238) target = $region44
        $region43: #{tpu_custom_call.1} parent=39 // pred_region
          %241 = dma.done %s234, 4096
        $region44: #{tpu_custom_call.1} parent=39 // pred_fallthru
          _
        // Predicated region
        $region45: #{tpu_custom_call.1} parent=39 // pred_check
          %p242 = pneg %p65
        $region46: #{tpu_custom_call.1} parent=39 // pred_check_branch
          %244 = sbr.rel (%p242) target = $region48
        $region47: #{tpu_custom_call.1} parent=39 // pred_region
          %245 = dma.done [#allocation7], 1024
        $region48: #{tpu_custom_call.1} parent=39 // pred_fallthru
          _
        // Predicated region
        $region49: #{tpu_custom_call.1} parent=39 // pred_check
          %p246 = pneg %p107
        $region50: #{tpu_custom_call.1} parent=39 // pred_check_branch
          %248 = sbr.rel (%p246) target = $region52
        $region51: #{tpu_custom_call.1} parent=39 // pred_region
          %249 = dma.done [#allocation7], 9216
        $region52: #{tpu_custom_call.1} parent=39 // pred_fallthru
          _
        %s250 = sand.u32 %s31, 1
        %s251 = scalar_lea.sflag [#allocation4], %s250
        %s252 = sand.u32 %s31, 1
        %s253 = smul.addr %s252, 256
        %s254 = scalar_lea.vmem [#allocation3], %s253
        %p255 = pneg %p44
        %p256 = pneg %p41
        %p257 = pneg %p65
        %p258 = pneg %p62
        %p259 = pneg %p86
        %p260 = pneg %p83
        %p261 = pneg %p107
        %p262 = pneg %p104
        %p263 = pneg %p128
        %p264 = pneg %p125
        %p265 = pneg %p154
        %p266 = pneg %p151
        %s267 = sand.u32 %s141, 1
        %s268 = scalar_lea.sflag [#allocation5], %s267
        %s269 = sand.u32 %s141, 1
        %s270 = smul.addr %s269, 256
        %s271 = scalar_lea.vmem [#allocation9], %s270
        %p273 = scmp.eq.s32.totalorder %s23, 0
        // Predicated region
        $region53: #{tpu_custom_call.1} parent=39 // pred_check
          %p274 = pneg %p273
        $region54: #{tpu_custom_call.1} parent=39 // pred_check_branch
          %276 = sbr.rel (%p274) target = $region56
        $region55: #{tpu_custom_call.1} parent=39 // pred_region
          %277 = vst [vmem:[#allocation2] sm:$0xff] 0.0
          %278 = vst [vmem:[#allocation2 + $0x8] sm:$0xff] 0.0
          %279 = vst [vmem:[#allocation2 + $0x10] sm:$0x3] 0.0
          %280 = vst [vmem:[#allocation2 + $0x18] sm:$0xff] 0.0
          %281 = vst [vmem:[#allocation2 + $0x20] sm:$0xff] 0.0
          %282 = vst [vmem:[#allocation2 + $0x28] sm:$0x3] 0.0
          %283 = vst [vmem:[#allocation2 + $0x30] sm:$0xff] 0.0
          %284 = vst [vmem:[#allocation2 + $0x38] sm:$0xff] 0.0
          %285 = vst [vmem:[#allocation2 + $0x40] sm:$0x3] 0.0
          %286 = vst [vmem:[#allocation2 + $0x48] sm:$0xff] 0.0
          %287 = vst [vmem:[#allocation2 + $0x50] sm:$0xff] 0.0
          %288 = vst [vmem:[#allocation2 + $0x58] sm:$0x3] 0.0
          %289 = vst [vmem:[#allocation2 + $0x60] sm:$0xff] 0.0
          %290 = vst [vmem:[#allocation2 + $0x68] sm:$0xff] 0.0
          %291 = vst [vmem:[#allocation2 + $0x70] sm:$0x3] 0.0
          %292 = vst [vmem:[#allocation2 + $0x78] sm:$0xff] 0.0
          %293 = vst [vmem:[#allocation2 + $0x80] sm:$0xff] 0.0
          %294 = vst [vmem:[#allocation2 + $0x88] sm:$0x3] 0.0
          %295 = vst [vmem:[#allocation2 + $0x90] sm:$0xff] 0.0
          %296 = vst [vmem:[#allocation2 + $0x98] sm:$0xff] 0.0
          %297 = vst [vmem:[#allocation2 + $0xa0] sm:$0x3] 0.0
          %298 = vst [vmem:[#allocation2 + $0xa8] sm:$0xff] 0.0
          %299 = vst [vmem:[#allocation2 + $0xb0] sm:$0xff] 0.0
          %300 = vst [vmem:[#allocation2 + $0xb8] sm:$0x3] 0.0
          %301 = vst [vmem:[#allocation2 + $0xc0] sm:$0xff] 0.0
          %302 = vst [vmem:[#allocation2 + $0xc8] sm:$0xff] 0.0
          %303 = vst [vmem:[#allocation2 + $0xd0] sm:$0x3] 0.0
          %304 = vst [vmem:[#allocation2 + $0xd8] sm:$0xff] 0.0
          %305 = vst [vmem:[#allocation2 + $0xe0] sm:$0xff] 0.0
          %306 = vst [vmem:[#allocation2 + $0xe8] sm:$0x3] 0.0
          %307 = vst [vmem:[#allocation2 + $0xf0] sm:$0xff] 0.0
          %308 = vst [vmem:[#allocation2 + $0xf8] sm:$0xff] 0.0
          %309 = vst [vmem:[#allocation2 + $0x100] sm:$0x3] 0.0
          %310 = vst [vmem:[#allocation2 + $0x108] sm:$0xff] 0.0
          %311 = vst [vmem:[#allocation2 + $0x110] sm:$0xff] 0.0
          %312 = vst [vmem:[#allocation2 + $0x118] sm:$0x3] 0.0
          %313 = vst [vmem:[#allocation2 + $0x120] sm:$0xff] 0.0
          %314 = vst [vmem:[#allocation2 + $0x128] sm:$0xff] 0.0
          %315 = vst [vmem:[#allocation2 + $0x130] sm:$0x3] 0.0
          %316 = vst [vmem:[#allocation2 + $0x138] sm:$0xff] 0.0
          %317 = vst [vmem:[#allocation2 + $0x140] sm:$0xff] 0.0
          %318 = vst [vmem:[#allocation2 + $0x148] sm:$0x3] 0.0
          %319 = vst [vmem:[#allocation2 + $0x150] sm:$0xff] 0.0
          %320 = vst [vmem:[#allocation2 + $0x158] sm:$0xff] 0.0
          %321 = vst [vmem:[#allocation2 + $0x160] sm:$0x3] 0.0
          %322 = vst [vmem:[#allocation2 + $0x168] sm:$0xff] 0.0
          %323 = vst [vmem:[#allocation2 + $0x170] sm:$0xff] 0.0
          %324 = vst [vmem:[#allocation2 + $0x178] sm:$0x3] 0.0
          %325 = vst [vmem:[#allocation2 + $0x180] sm:$0xff] 0.0
          %326 = vst [vmem:[#allocation2 + $0x188] sm:$0xff] 0.0
          %327 = vst [vmem:[#allocation2 + $0x190] sm:$0x3] 0.0
          %328 = vst [vmem:[#allocation2 + $0x198] sm:$0xff] 0.0
          %329 = vst [vmem:[#allocation2 + $0x1a0] sm:$0xff] 0.0
          %330 = vst [vmem:[#allocation2 + $0x1a8] sm:$0x3] 0.0
        $region56: #{tpu_custom_call.1} parent=39 // pred_fallthru
          _
        %v331 = vld [vmem:[%s237] sm:$0xff]
        %v332 = vld [vmem:[%s237 + $0x8] sm:$0xff]
        %v333 = vld [vmem:[%s237 + $0x10] sm:$0xff]
        %v334 = vld [vmem:[%s237 + $0x18] sm:$0xff]
        %v335 = vld [vmem:[%s237 + $0x20] sm:$0xff]
        %v336 = vld [vmem:[%s237 + $0x28] sm:$0xff]
        %v337 = vld [vmem:[%s237 + $0x30] sm:$0xff]
        %v338 = vld [vmem:[%s237 + $0x38] sm:$0xff]
        %v339 = vld [vmem:[%s237 + $0x40] sm:$0xff]
        %v340 = vld [vmem:[%s237 + $0x48] sm:$0xff]
        %v341 = vld [vmem:[%s237 + $0x50] sm:$0xff]
        %v342 = vld [vmem:[%s237 + $0x58] sm:$0xff]
        %v343 = vld [vmem:[%s237 + $0x60] sm:$0xff]
        %v344 = vld [vmem:[%s237 + $0x68] sm:$0xff]
        %v345 = vld [vmem:[%s237 + $0x70] sm:$0xff]
        %v346 = vld [vmem:[%s237 + $0x78] sm:$0xff]
        %v347 = vld [vmem:[%s237 + $0x80] sm:$0xff]
        %v348 = vld [vmem:[%s237 + $0x88] sm:$0xff]
        %v349 = vld [vmem:[%s237 + $0x90] sm:$0xff]
        %v350 = vld [vmem:[%s237 + $0x98] sm:$0xff]
        %v351 = vld [vmem:[%s237 + $0xa0] sm:$0xff]
        %v352 = vld [vmem:[%s237 + $0xa8] sm:$0xff]
        %v353 = vld [vmem:[%s237 + $0xb0] sm:$0xff]
        %v354 = vld [vmem:[%s237 + $0xb8] sm:$0xff]
        %v355 = vld [vmem:[%s237 + $0xc0] sm:$0xff]
        %v356 = vld [vmem:[%s237 + $0xc8] sm:$0xff]
        %v357 = vld [vmem:[%s237 + $0xd0] sm:$0xff]
        %v358 = vld [vmem:[%s237 + $0xd8] sm:$0xff]
        %v359 = vld [vmem:[%s237 + $0xe0] sm:$0xff]
        %v360 = vld [vmem:[%s237 + $0xe8] sm:$0xff]
        %v361 = vld [vmem:[%s237 + $0xf0] sm:$0xff]
        %v362 = vld [vmem:[%s237 + $0xf8] sm:$0xff]
        %v363 = vpack.c.bf16 %v332, %v331
        %v364 = vpack.c.bf16 %v334, %v333
        %v365 = vpack.c.bf16 %v336, %v335
        %v366 = vpack.c.bf16 %v338, %v337
        %v367 = vpack.c.bf16 %v340, %v339
        %v368 = vpack.c.bf16 %v342, %v341
        %v369 = vpack.c.bf16 %v344, %v343
        %v370 = vpack.c.bf16 %v346, %v345
        %v371 = vpack.c.bf16 %v348, %v347
        %v372 = vpack.c.bf16 %v350, %v349
        %v373 = vpack.c.bf16 %v352, %v351
        %v374 = vpack.c.bf16 %v354, %v353
        %v375 = vpack.c.bf16 %v356, %v355
        %v376 = vpack.c.bf16 %v358, %v357
        %v377 = vpack.c.bf16 %v360, %v359
        %v378 = vpack.c.bf16 %v362, %v361
        %v379 = vld [vmem:[#allocation6] sm:$0xf]
        %v380 = vld [vmem:[#allocation6 + $0x4] sm:$0xf]
        %v381 = vld [vmem:[#allocation6 + $0x8] sm:$0xf]
        %v382 = vld [vmem:[#allocation6 + $0xc] sm:$0xf]
        %v383 = vld [vmem:[#allocation6 + $0x10] sm:$0xf]
        %v384 = vld [vmem:[#allocation6 + $0x14] sm:$0xf]
        %v385 = vld [vmem:[#allocation6 + $0x18] sm:$0xf]
        %v386 = vld [vmem:[#allocation6 + $0x1c] sm:$0xf]
        %v387 = vld [vmem:[#allocation6 + $0x20] sm:$0xf]
        %v388 = vld [vmem:[#allocation6 + $0x24] sm:$0xf]
        %v389 = vld [vmem:[#allocation6 + $0x28] sm:$0xf]
        %v390 = vld [vmem:[#allocation6 + $0x2c] sm:$0xf]
        %v391 = vld [vmem:[#allocation6 + $0x30] sm:$0xf]
        %v392 = vld [vmem:[#allocation6 + $0x34] sm:$0xf]
        %v393 = vld [vmem:[#allocation6 + $0x38] sm:$0xf]
        %v394 = vld [vmem:[#allocation6 + $0x3c] sm:$0xf]
        %v395 = vld [vmem:[%s2] sm:$0x1]
        %v397 = vlaneseq
        %v398 = vshrl.u32 %v397, 7
        %v399 = vsub.s32 0, %v398
        %v400 = vrot.slane %v395, %v399
        %v418 = vunpack.c.l.b16 %v379
        %v419 = vunpack.c.l.b16 %v380
        %v420 = vunpack.c.l.b16 %v381
        %v421 = vunpack.c.l.b16 %v382
        %v422 = vunpack.c.l.b16 %v383
        %v423 = vunpack.c.l.b16 %v384
        %v424 = vunpack.c.l.b16 %v385
        %v425 = vunpack.c.l.b16 %v386
        %v426 = vunpack.c.l.b16 %v387
        %v427 = vunpack.c.l.b16 %v388
        %v428 = vunpack.c.l.b16 %v389
        %v429 = vunpack.c.l.b16 %v390
        %v430 = vunpack.c.l.b16 %v391
        %v431 = vunpack.c.l.b16 %v392
        %v432 = vunpack.c.l.b16 %v393
        %v433 = vunpack.c.l.b16 %v394
        %v434 = vpack.c.b16 %v419, %v418
        %v435 = vpack.c.b16 %v421, %v420
        %v436 = vpack.c.b16 %v423, %v422
        %v437 = vpack.c.b16 %v425, %v424
        %v438 = vpack.c.b16 %v427, %v426
        %v439 = vpack.c.b16 %v429, %v428
        %v440 = vpack.c.b16 %v431, %v430
        %v441 = vpack.c.b16 %v433, %v432
        %450 = vmatprep.subr.bf16.mxu0 0
        %451 = vmatpush1.bf16.msra.mxu0 %v434
        %452 = vmatprep.subr.bf16.mxu0 0
        %453 = vmatpush1.bf16.msra.mxu0 %v435
        %454 = vmatprep.subr.bf16.mxu0 0
        %455 = vmatpush1.bf16.msra.mxu0 %v436
        %456 = vmatprep.subr.bf16.mxu0 0
        %457 = vmatpush1.bf16.msra.mxu0 %v437
        %458 = vmatprep.subr.bf16.mxu0 0
        %459 = vmatpush1.bf16.msra.mxu0 %v438
        %460 = vmatprep.subr.bf16.mxu0 0
        %461 = vmatpush1.bf16.msra.mxu0 %v439
        %462 = vmatprep.subr.bf16.mxu0 0
        %463 = vmatpush1.bf16.msra.mxu0 %v440
        %464 = vmatprep.subr.bf16.mxu0 0
        %465 = vmatpush1.bf16.msra.mxu0 %v441
        %466 = vmatprep.subr.bf16.mxu0 0
        %467 = vmatpush1.bf16.msra.mxu0 0
        %468 = vmatprep.subr.bf16.mxu0 0
        %469 = vmatpush1.bf16.msra.mxu0 0
        %470 = vmatprep.subr.bf16.mxu0 0
        %471 = vmatpush1.bf16.msra.mxu0 0
        %472 = vmatprep.subr.bf16.mxu0 0
        %473 = vmatpush1.bf16.msra.mxu0 0
        %474 = vmatprep.subr.bf16.mxu0 0
        %475 = vmatpush1.bf16.msra.mxu0 0
        %476 = vmatprep.subr.bf16.mxu0 0
        %477 = vmatpush1.bf16.msra.mxu0 0
        %478 = vmatprep.subr.bf16.mxu0 0
        %479 = vmatpush1.bf16.msra.mxu0 0
        %480 = vmatprep.subr.bf16.mxu0 0
        %481 = vmatpush1.bf16.msra.mxu0 0
        %482 = vmatprep.mubr.bf16.mxu0 0
        %483 = vmatmul.mubr.bf16.gmra.mrb[0].mxu0 %v363
        %v484 = vpop.f32.mrb[0].mxu0
        %v485 = vadd.f32 %v400, %v484
        %v486 = vpop.f32.mrb[0].mxu0
        %v487 = vpop.f32.mrb[0].mxu0
        %v488 = vadd.f32 %v400, %v487
        %v489 = vpop.f32.mrb[0].mxu0
        %490 = vmatprep.mubr.bf16.mxu0 0
        %491 = vmatmul.mubr.bf16.gmra.mrb[0].mxu0 %v364
        %v492 = vpop.f32.mrb[0].mxu0
        %v493 = vadd.f32 %v400, %v492
        %v494 = vpop.f32.mrb[0].mxu0
        %v495 = vpop.f32.mrb[0].mxu0
        %v496 = vadd.f32 %v400, %v495
        %v497 = vpop.f32.mrb[0].mxu0
        %498 = vmatprep.mubr.bf16.mxu0 0
        %499 = vmatmul.mubr.bf16.gmra.mrb[0].mxu0 %v365
        %v500 = vpop.f32.mrb[0].mxu0
        %v501 = vadd.f32 %v400, %v500
        %v502 = vpop.f32.mrb[0].mxu0
        %v503 = vpop.f32.mrb[0].mxu0
        %v504 = vadd.f32 %v400, %v503
        %v505 = vpop.f32.mrb[0].mxu0
        %506 = vmatprep.mubr.bf16.mxu0 0
        %507 = vmatmul.mubr.bf16.gmra.mrb[0].mxu0 %v366
        %v508 = vpop.f32.mrb[0].mxu0
        %v509 = vadd.f32 %v400, %v508
        %v510 = vpop.f32.mrb[0].mxu0
        %v511 = vpop.f32.mrb[0].mxu0
        %v512 = vadd.f32 %v400, %v511
        %v513 = vpop.f32.mrb[0].mxu0
        %514 = vmatprep.mubr.bf16.mxu0 0
        %515 = vmatmul.mubr.bf16.gmra.mrb[0].mxu0 %v367
        %v516 = vpop.f32.mrb[0].mxu0
        %v517 = vadd.f32 %v400, %v516
        %v518 = vpop.f32.mrb[0].mxu0
        %v519 = vpop.f32.mrb[0].mxu0
        %v520 = vadd.f32 %v400, %v519
        %v521 = vpop.f32.mrb[0].mxu0
        %522 = vmatprep.mubr.bf16.mxu0 0
        %523 = vmatmul.mubr.bf16.gmra.mrb[0].mxu0 %v368
        %v524 = vpop.f32.mrb[0].mxu0
        %v525 = vadd.f32 %v400, %v524
        %v526 = vpop.f32.mrb[0].mxu0
        %v527 = vpop.f32.mrb[0].mxu0
        %v528 = vadd.f32 %v400, %v527
        %v529 = vpop.f32.mrb[0].mxu0
        %530 = vmatprep.mubr.bf16.mxu0 0
        %531 = vmatmul.mubr.bf16.gmra.mrb[0].mxu0 %v369
        %v532 = vpop.f32.mrb[0].mxu0
        %v533 = vadd.f32 %v400, %v532
        %v534 = vpop.f32.mrb[0].mxu0
        %v535 = vpop.f32.mrb[0].mxu0
        %v536 = vadd.f32 %v400, %v535
        %v537 = vpop.f32.mrb[0].mxu0
        %538 = vmatprep.mubr.bf16.mxu0 0
        %539 = vmatmul.mubr.bf16.gmra.mrb[0].mxu0 %v370
        %v540 = vpop.f32.mrb[0].mxu0
        %v541 = vadd.f32 %v400, %v540
        %v542 = vpop.f32.mrb[0].mxu0
        %v543 = vpop.f32.mrb[0].mxu0
        %v544 = vadd.f32 %v400, %v543
        %v545 = vpop.f32.mrb[0].mxu0
        %546 = vmatprep.mubr.bf16.mxu0 0
        %547 = vmatmul.mubr.bf16.gmra.mrb[0].mxu0 %v371
        %v548 = vpop.f32.mrb[0].mxu0
        %v549 = vadd.f32 %v400, %v548
        %v550 = vpop.f32.mrb[0].mxu0
        %v551 = vpop.f32.mrb[0].mxu0
        %v552 = vadd.f32 %v400, %v551
        %v553 = vpop.f32.mrb[0].mxu0
        %554 = vmatprep.mubr.bf16.mxu0 0
        %555 = vmatmul.mubr.bf16.gmra.mrb[0].mxu0 %v372
        %v556 = vpop.f32.mrb[0].mxu0
        %v557 = vadd.f32 %v400, %v556
        %v558 = vpop.f32.mrb[0].mxu0
        %v559 = vpop.f32.mrb[0].mxu0
        %v560 = vadd.f32 %v400, %v559
        %v561 = vpop.f32.mrb[0].mxu0
        %562 = vmatprep.mubr.bf16.mxu0 0
        %563 = vmatmul.mubr.bf16.gmra.mrb[0].mxu0 %v373
        %v564 = vpop.f32.mrb[0].mxu0
        %v565 = vadd.f32 %v400, %v564
        %v566 = vpop.f32.mrb[0].mxu0
        %v567 = vpop.f32.mrb[0].mxu0
        %v568 = vadd.f32 %v400, %v567
        %v569 = vpop.f32.mrb[0].mxu0
        %570 = vmatprep.mubr.bf16.mxu0 0
        %571 = vmatmul.mubr.bf16.gmra.mrb[0].mxu0 %v374
        %v572 = vpop.f32.mrb[0].mxu0
        %v573 = vadd.f32 %v400, %v572
        %v574 = vpop.f32.mrb[0].mxu0
        %v575 = vpop.f32.mrb[0].mxu0
        %v576 = vadd.f32 %v400, %v575
        %v577 = vpop.f32.mrb[0].mxu0
        %578 = vmatprep.mubr.bf16.mxu0 0
        %579 = vmatmul.mubr.bf16.gmra.mrb[0].mxu0 %v375
        %v580 = vpop.f32.mrb[0].mxu0
        %v581 = vadd.f32 %v400, %v580
        %v582 = vpop.f32.mrb[0].mxu0
        %v583 = vpop.f32.mrb[0].mxu0
        %v584 = vadd.f32 %v400, %v583
        %v585 = vpop.f32.mrb[0].mxu0
        %586 = vmatprep.mubr.bf16.mxu0 0
        %587 = vmatmul.mubr.bf16.gmra.mrb[0].mxu0 %v376
        %v588 = vpop.f32.mrb[0].mxu0
        %v589 = vadd.f32 %v400, %v588
        %v590 = vpop.f32.mrb[0].mxu0
        %v591 = vpop.f32.mrb[0].mxu0
        %v592 = vadd.f32 %v400, %v591
        %v593 = vpop.f32.mrb[0].mxu0
        %594 = vmatprep.mubr.bf16.mxu0 0
        %595 = vmatmul.mubr.bf16.gmra.mrb[0].mxu0 %v377
        %v596 = vpop.f32.mrb[0].mxu0
        %v597 = vadd.f32 %v400, %v596
        %v598 = vpop.f32.mrb[0].mxu0
        %v599 = vpop.f32.mrb[0].mxu0
        %v600 = vadd.f32 %v400, %v599
        %v601 = vpop.f32.mrb[0].mxu0
        %602 = vmatprep.mubr.bf16.mxu0 0
        %603 = vmatmul.mubr.bf16.gmra.mrb[0].mxu0 %v378
        %v604 = vpop.f32.mrb[0].mxu0
        %v605 = vadd.f32 %v400, %v604
        %v606 = vpop.f32.mrb[0].mxu0
        %v607 = vpop.f32.mrb[0].mxu0
        %v608 = vadd.f32 %v400, %v607
        %v609 = vpop.f32.mrb[0].mxu0
        %610 = vdwg.mxu0
        %v611 = vmax.f32 %v485, 0.0
        %v612 = vmax.f32 %v488, 0.0
        %v613 = vmax.f32 %v493, 0.0
        %v614 = vmax.f32 %v496, 0.0
        %v615 = vmax.f32 %v501, 0.0
        %v616 = vmax.f32 %v504, 0.0
        %v617 = vmax.f32 %v509, 0.0
        %v618 = vmax.f32 %v512, 0.0
        %v619 = vmax.f32 %v517, 0.0
        %v620 = vmax.f32 %v520, 0.0
        %v621 = vmax.f32 %v525, 0.0
        %v622 = vmax.f32 %v528, 0.0
        %v623 = vmax.f32 %v533, 0.0
        %v624 = vmax.f32 %v536, 0.0
        %v625 = vmax.f32 %v541, 0.0
        %v626 = vmax.f32 %v544, 0.0
        %v627 = vmax.f32 %v549, 0.0
        %v628 = vmax.f32 %v552, 0.0
        %v629 = vmax.f32 %v557, 0.0
        %v630 = vmax.f32 %v560, 0.0
        %v631 = vmax.f32 %v565, 0.0
        %v632 = vmax.f32 %v568, 0.0
        %v633 = vmax.f32 %v573, 0.0
        %v634 = vmax.f32 %v576, 0.0
        %v635 = vmax.f32 %v581, 0.0
        %v636 = vmax.f32 %v584, 0.0
        %v637 = vmax.f32 %v589, 0.0
        %v638 = vmax.f32 %v592, 0.0
        %v639 = vmax.f32 %v597, 0.0
        %v640 = vmax.f32 %v600, 0.0
        %v641 = vmax.f32 %v605, 0.0
        %v642 = vmax.f32 %v608, 0.0
        %s643 = scalar_lea.vmem [#allocation2], 24
        %644 = vst [vmem:[%s643 + $0x1] sm:$0xff] %v611
        %645 = vst [vmem:[%s643 + $0x9] sm:$0xff] %v612
        %646 = vst [vmem:[%s643 + $0x19] sm:$0xff] %v613
        %647 = vst [vmem:[%s643 + $0x21] sm:$0xff] %v614
        %648 = vst [vmem:[%s643 + $0x31] sm:$0xff] %v615
        %649 = vst [vmem:[%s643 + $0x39] sm:$0xff] %v616
        %650 = vst [vmem:[%s643 + $0x49] sm:$0xff] %v617
        %651 = vst [vmem:[%s643 + $0x51] sm:$0xff] %v618
        %652 = vst [vmem:[%s643 + $0x61] sm:$0xff] %v619
        %653 = vst [vmem:[%s643 + $0x69] sm:$0xff] %v620
        %654 = vst [vmem:[%s643 + $0x79] sm:$0xff] %v621
        %655 = vst [vmem:[%s643 + $0x81] sm:$0xff] %v622
        %656 = vst [vmem:[%s643 + $0x91] sm:$0xff] %v623
        %657 = vst [vmem:[%s643 + $0x99] sm:$0xff] %v624
        %658 = vst [vmem:[%s643 + $0xa9] sm:$0xff] %v625
        %659 = vst [vmem:[%s643 + $0xb1] sm:$0xff] %v626
        %660 = vst [vmem:[%s643 + $0xc1] sm:$0xff] %v627
        %661 = vst [vmem:[%s643 + $0xc9] sm:$0xff] %v628
        %662 = vst [vmem:[%s643 + $0xd9] sm:$0xff] %v629
        %663 = vst [vmem:[%s643 + $0xe1] sm:$0xff] %v630
        %664 = vst [vmem:[%s643 + $0xf1] sm:$0xff] %v631
        %665 = vst [vmem:[%s643 + $0xf9] sm:$0xff] %v632
        %666 = vst [vmem:[%s643 + $0x109] sm:$0xff] %v633
        %667 = vst [vmem:[%s643 + $0x111] sm:$0xff] %v634
        %668 = vst [vmem:[%s643 + $0x121] sm:$0xff] %v635
        %669 = vst [vmem:[%s643 + $0x129] sm:$0xff] %v636
        %670 = vst [vmem:[%s643 + $0x139] sm:$0xff] %v637
        %671 = vst [vmem:[%s643 + $0x141] sm:$0xff] %v638
        %672 = vst [vmem:[%s643 + $0x151] sm:$0xff] %v639
        %673 = vst [vmem:[%s643 + $0x159] sm:$0xff] %v640
        %674 = vst [vmem:[%s643 + $0x169] sm:$0xff] %v641
        %675 = vst [vmem:[%s643 + $0x171] sm:$0xff] %v642
        %v676 = vld [vmem:[#allocation2] sm:$0xff]
        %v677 = vld [vmem:[#allocation2 + $0x8] sm:$0xff]
        %v678 = vld [vmem:[#allocation2 + $0x18] sm:$0xff]
        %v679 = vld [vmem:[#allocation2 + $0x20] sm:$0xff]
        %v680 = vld [vmem:[#allocation2 + $0x30] sm:$0xff]
        %v681 = vld [vmem:[#allocation2 + $0x38] sm:$0xff]
        %v682 = vld [vmem:[#allocation2 + $0x48] sm:$0xff]
        %v683 = vld [vmem:[#allocation2 + $0x50] sm:$0xff]
        %v684 = vld [vmem:[#allocation2 + $0x60] sm:$0xff]
        %v685 = vld [vmem:[#allocation2 + $0x68] sm:$0xff]
        %v686 = vld [vmem:[#allocation2 + $0x78] sm:$0xff]
        %v687 = vld [vmem:[#allocation2 + $0x80] sm:$0xff]
        %v688 = vld [vmem:[#allocation2 + $0x90] sm:$0xff]
        %v689 = vld [vmem:[#allocation2 + $0x98] sm:$0xff]
        %v690 = vld [vmem:[#allocation2 + $0xa8] sm:$0xff]
        %v691 = vld [vmem:[#allocation2 + $0xb0] sm:$0xff]
        %v692 = vld [vmem:[#allocation2 + $0xc0] sm:$0xff]
        %v693 = vld [vmem:[#allocation2 + $0xc8] sm:$0xff]
        %v694 = vld [vmem:[#allocation2 + $0xd8] sm:$0xff]
        %v695 = vld [vmem:[#allocation2 + $0xe0] sm:$0xff]
        %v696 = vld [vmem:[#allocation2 + $0xf0] sm:$0xff]
        %v697 = vld [vmem:[#allocation2 + $0xf8] sm:$0xff]
        %v698 = vld [vmem:[#allocation2 + $0x108] sm:$0xff]
        %v699 = vld [vmem:[#allocation2 + $0x110] sm:$0xff]
        %v700 = vld [vmem:[#allocation2 + $0x120] sm:$0xff]
        %v701 = vld [vmem:[#allocation2 + $0x128] sm:$0xff]
        %v702 = vld [vmem:[#allocation2 + $0x138] sm:$0xff]
        %v703 = vld [vmem:[#allocation2 + $0x140] sm:$0xff]
        %v704 = vld [vmem:[#allocation2 + $0x150] sm:$0xff]
        %v705 = vld [vmem:[#allocation2 + $0x158] sm:$0xff]
        %v706 = vld [vmem:[#allocation2 + $0x168] sm:$0xff]
        %v707 = vld [vmem:[#allocation2 + $0x170] sm:$0xff]
        %v708 = vpack.c.bf16 %v677, %v676
        %v709 = vpack.c.bf16 %v679, %v678
        %v710 = vpack.c.bf16 %v681, %v680
        %v711 = vpack.c.bf16 %v683, %v682
        %v712 = vpack.c.bf16 %v685, %v684
        %v713 = vpack.c.bf16 %v687, %v686
        %v714 = vpack.c.bf16 %v689, %v688
        %v715 = vpack.c.bf16 %v691, %v690
        %v716 = vpack.c.bf16 %v693, %v692
        %v717 = vpack.c.bf16 %v695, %v694
        %v718 = vpack.c.bf16 %v697, %v696
        %v719 = vpack.c.bf16 %v699, %v698
        %v720 = vpack.c.bf16 %v701, %v700
        %v721 = vpack.c.bf16 %v703, %v702
        %v722 = vpack.c.bf16 %v705, %v704
        %v723 = vpack.c.bf16 %v707, %v706
        %v724 = vld [vmem:[#allocation2 + $0x1] sm:$0xff]
        %v725 = vld [vmem:[#allocation2 + $0x9] sm:$0xff]
        %v726 = vld [vmem:[#allocation2 + $0x19] sm:$0xff]
        %v727 = vld [vmem:[#allocation2 + $0x21] sm:$0xff]
        %v728 = vld [vmem:[#allocation2 + $0x31] sm:$0xff]
        %v729 = vld [vmem:[#allocation2 + $0x39] sm:$0xff]
        %v730 = vld [vmem:[#allocation2 + $0x49] sm:$0xff]
        %v731 = vld [vmem:[#allocation2 + $0x51] sm:$0xff]
        %v732 = vld [vmem:[#allocation2 + $0x61] sm:$0xff]
        %v733 = vld [vmem:[#allocation2 + $0x69] sm:$0xff]
        %v734 = vld [vmem:[#allocation2 + $0x79] sm:$0xff]
        %v735 = vld [vmem:[#allocation2 + $0x81] sm:$0xff]
        %v736 = vld [vmem:[#allocation2 + $0x91] sm:$0xff]
        %v737 = vld [vmem:[#allocation2 + $0x99] sm:$0xff]
        %v738 = vld [vmem:[#allocation2 + $0xa9] sm:$0xff]
        %v739 = vld [vmem:[#allocation2 + $0xb1] sm:$0xff]
        %v740 = vld [vmem:[#allocation2 + $0xc1] sm:$0xff]
        %v741 = vld [vmem:[#allocation2 + $0xc9] sm:$0xff]
        %v742 = vld [vmem:[#allocation2 + $0xd9] sm:$0xff]
        %v743 = vld [vmem:[#allocation2 + $0xe1] sm:$0xff]
        %v744 = vld [vmem:[#allocation2 + $0xf1] sm:$0xff]
        %v745 = vld [vmem:[#allocation2 + $0xf9] sm:$0xff]
        %v746 = vld [vmem:[#allocation2 + $0x109] sm:$0xff]
        %v747 = vld [vmem:[#allocation2 + $0x111] sm:$0xff]
        %v748 = vld [vmem:[#allocation2 + $0x121] sm:$0xff]
        %v749 = vld [vmem:[#allocation2 + $0x129] sm:$0xff]
        %v750 = vld [vmem:[#allocation2 + $0x139] sm:$0xff]
        %v751 = vld [vmem:[#allocation2 + $0x141] sm:$0xff]
        %v752 = vld [vmem:[#allocation2 + $0x151] sm:$0xff]
        %v753 = vld [vmem:[#allocation2 + $0x159] sm:$0xff]
        %v754 = vld [vmem:[#allocation2 + $0x169] sm:$0xff]
        %v755 = vld [vmem:[#allocation2 + $0x171] sm:$0xff]
        %v756 = vpack.c.bf16 %v725, %v724
        %v757 = vpack.c.bf16 %v727, %v726
        %v758 = vpack.c.bf16 %v729, %v728
        %v759 = vpack.c.bf16 %v731, %v730
        %v760 = vpack.c.bf16 %v733, %v732
        %v761 = vpack.c.bf16 %v735, %v734
        %v762 = vpack.c.bf16 %v737, %v736
        %v763 = vpack.c.bf16 %v739, %v738
        %v764 = vpack.c.bf16 %v741, %v740
        %v765 = vpack.c.bf16 %v743, %v742
        %v766 = vpack.c.bf16 %v745, %v744
        %v767 = vpack.c.bf16 %v747, %v746
        %v768 = vpack.c.bf16 %v749, %v748
        %v769 = vpack.c.bf16 %v751, %v750
        %v770 = vpack.c.bf16 %v753, %v752
        %v771 = vpack.c.bf16 %v755, %v754
        %v772 = vld [vmem:[#allocation2 + $0x2] sm:$0xff]
        %v773 = vld [vmem:[#allocation2 + $0xa] sm:$0xff]
        %v774 = vld [vmem:[#allocation2 + $0x1a] sm:$0xff]
        %v775 = vld [vmem:[#allocation2 + $0x22] sm:$0xff]
        %v776 = vld [vmem:[#allocation2 + $0x32] sm:$0xff]
        %v777 = vld [vmem:[#allocation2 + $0x3a] sm:$0xff]
        %v778 = vld [vmem:[#allocation2 + $0x4a] sm:$0xff]
        %v779 = vld [vmem:[#allocation2 + $0x52] sm:$0xff]
        %v780 = vld [vmem:[#allocation2 + $0x62] sm:$0xff]
        %v781 = vld [vmem:[#allocation2 + $0x6a] sm:$0xff]
        %v782 = vld [vmem:[#allocation2 + $0x7a] sm:$0xff]
        %v783 = vld [vmem:[#allocation2 + $0x82] sm:$0xff]
        %v784 = vld [vmem:[#allocation2 + $0x92] sm:$0xff]
        %v785 = vld [vmem:[#allocation2 + $0x9a] sm:$0xff]
        %v786 = vld [vmem:[#allocation2 + $0xaa] sm:$0xff]
        %v787 = vld [vmem:[#allocation2 + $0xb2] sm:$0xff]
        %v788 = vld [vmem:[#allocation2 + $0xc2] sm:$0xff]
        %v789 = vld [vmem:[#allocation2 + $0xca] sm:$0xff]
        %v790 = vld [vmem:[#allocation2 + $0xda] sm:$0xff]
        %v791 = vld [vmem:[#allocation2 + $0xe2] sm:$0xff]
        %v792 = vld [vmem:[#allocation2 + $0xf2] sm:$0xff]
        %v793 = vld [vmem:[#allocation2 + $0xfa] sm:$0xff]
        %v794 = vld [vmem:[#allocation2 + $0x10a] sm:$0xff]
        %v795 = vld [vmem:[#allocation2 + $0x112] sm:$0xff]
        %v796 = vld [vmem:[#allocation2 + $0x122] sm:$0xff]
        %v797 = vld [vmem:[#allocation2 + $0x12a] sm:$0xff]
        %v798 = vld [vmem:[#allocation2 + $0x13a] sm:$0xff]
        %v799 = vld [vmem:[#allocation2 + $0x142] sm:$0xff]
        %v800 = vld [vmem:[#allocation2 + $0x152] sm:$0xff]
        %v801 = vld [vmem:[#allocation2 + $0x15a] sm:$0xff]
        %v802 = vld [vmem:[#allocation2 + $0x16a] sm:$0xff]
        %v803 = vld [vmem:[#allocation2 + $0x172] sm:$0xff]
        %v804 = vpack.c.bf16 %v773, %v772
        %v805 = vpack.c.bf16 %v775, %v774
        %v806 = vpack.c.bf16 %v777, %v776
        %v807 = vpack.c.bf16 %v779, %v778
        %v808 = vpack.c.bf16 %v781, %v780
        %v809 = vpack.c.bf16 %v783, %v782
        %v810 = vpack.c.bf16 %v785, %v784
        %v811 = vpack.c.bf16 %v787, %v786
        %v812 = vpack.c.bf16 %v789, %v788
        %v813 = vpack.c.bf16 %v791, %v790
        %v814 = vpack.c.bf16 %v793, %v792
        %v815 = vpack.c.bf16 %v795, %v794
        %v816 = vpack.c.bf16 %v797, %v796
        %v817 = vpack.c.bf16 %v799, %v798
        %v818 = vpack.c.bf16 %v801, %v800
        %v819 = vpack.c.bf16 %v803, %v802
        %v820 = vld [vmem:[%s643] sm:$0xff]
        %v821 = vld [vmem:[%s643 + $0x8] sm:$0xff]
        %v822 = vld [vmem:[%s643 + $0x18] sm:$0xff]
        %v823 = vld [vmem:[%s643 + $0x20] sm:$0xff]
        %v824 = vld [vmem:[%s643 + $0x30] sm:$0xff]
        %v825 = vld [vmem:[%s643 + $0x38] sm:$0xff]
        %v826 = vld [vmem:[%s643 + $0x48] sm:$0xff]
        %v827 = vld [vmem:[%s643 + $0x50] sm:$0xff]
        %v828 = vld [vmem:[%s643 + $0x60] sm:$0xff]
        %v829 = vld [vmem:[%s643 + $0x68] sm:$0xff]
        %v830 = vld [vmem:[%s643 + $0x78] sm:$0xff]
        %v831 = vld [vmem:[%s643 + $0x80] sm:$0xff]
        %v832 = vld [vmem:[%s643 + $0x90] sm:$0xff]
        %v833 = vld [vmem:[%s643 + $0x98] sm:$0xff]
        %v834 = vld [vmem:[%s643 + $0xa8] sm:$0xff]
        %v835 = vld [vmem:[%s643 + $0xb0] sm:$0xff]
        %v836 = vld [vmem:[%s643 + $0xc0] sm:$0xff]
        %v837 = vld [vmem:[%s643 + $0xc8] sm:$0xff]
        %v838 = vld [vmem:[%s643 + $0xd8] sm:$0xff]
        %v839 = vld [vmem:[%s643 + $0xe0] sm:$0xff]
        %v840 = vld [vmem:[%s643 + $0xf0] sm:$0xff]
        %v841 = vld [vmem:[%s643 + $0xf8] sm:$0xff]
        %v842 = vld [vmem:[%s643 + $0x108] sm:$0xff]
        %v843 = vld [vmem:[%s643 + $0x110] sm:$0xff]
        %v844 = vld [vmem:[%s643 + $0x120] sm:$0xff]
        %v845 = vld [vmem:[%s643 + $0x128] sm:$0xff]
        %v846 = vld [vmem:[%s643 + $0x138] sm:$0xff]
        %v847 = vld [vmem:[%s643 + $0x140] sm:$0xff]
        %v848 = vld [vmem:[%s643 + $0x150] sm:$0xff]
        %v849 = vld [vmem:[%s643 + $0x158] sm:$0xff]
        %v850 = vld [vmem:[%s643 + $0x168] sm:$0xff]
        %v851 = vld [vmem:[%s643 + $0x170] sm:$0xff]
        %v852 = vpack.c.bf16 %v821, %v820
        %v853 = vpack.c.bf16 %v823, %v822
        %v854 = vpack.c.bf16 %v825, %v824
        %v855 = vpack.c.bf16 %v827, %v826
        %v856 = vpack.c.bf16 %v829, %v828
        %v857 = vpack.c.bf16 %v831, %v830
        %v858 = vpack.c.bf16 %v833, %v832
        %v859 = vpack.c.bf16 %v835, %v834
        %v860 = vpack.c.bf16 %v837, %v836
        %v861 = vpack.c.bf16 %v839, %v838
        %v862 = vpack.c.bf16 %v841, %v840
        %v863 = vpack.c.bf16 %v843, %v842
        %v864 = vpack.c.bf16 %v845, %v844
        %v865 = vpack.c.bf16 %v847, %v846
        %v866 = vpack.c.bf16 %v849, %v848
        %v867 = vpack.c.bf16 %v851, %v850
        %v868 = vld [vmem:[%s643 + $0x1] sm:$0xff]
        %v869 = vld [vmem:[%s643 + $0x9] sm:$0xff]
        %v870 = vld [vmem:[%s643 + $0x19] sm:$0xff]
        %v871 = vld [vmem:[%s643 + $0x21] sm:$0xff]
        %v872 = vld [vmem:[%s643 + $0x31] sm:$0xff]
        %v873 = vld [vmem:[%s643 + $0x39] sm:$0xff]
        %v874 = vld [vmem:[%s643 + $0x49] sm:$0xff]
        %v875 = vld [vmem:[%s643 + $0x51] sm:$0xff]
        %v876 = vld [vmem:[%s643 + $0x61] sm:$0xff]
        %v877 = vld [vmem:[%s643 + $0x69] sm:$0xff]
        %v878 = vld [vmem:[%s643 + $0x79] sm:$0xff]
        %v879 = vld [vmem:[%s643 + $0x81] sm:$0xff]
        %v880 = vld [vmem:[%s643 + $0x91] sm:$0xff]
        %v881 = vld [vmem:[%s643 + $0x99] sm:$0xff]
        %v882 = vld [vmem:[%s643 + $0xa9] sm:$0xff]
        %v883 = vld [vmem:[%s643 + $0xb1] sm:$0xff]
        %v884 = vld [vmem:[%s643 + $0xc1] sm:$0xff]
        %v885 = vld [vmem:[%s643 + $0xc9] sm:$0xff]
        %v886 = vld [vmem:[%s643 + $0xd9] sm:$0xff]
        %v887 = vld [vmem:[%s643 + $0xe1] sm:$0xff]
        %v888 = vld [vmem:[%s643 + $0xf1] sm:$0xff]
        %v889 = vld [vmem:[%s643 + $0xf9] sm:$0xff]
        %v890 = vld [vmem:[%s643 + $0x109] sm:$0xff]
        %v891 = vld [vmem:[%s643 + $0x111] sm:$0xff]
        %v892 = vld [vmem:[%s643 + $0x121] sm:$0xff]
        %v893 = vld [vmem:[%s643 + $0x129] sm:$0xff]
        %v894 = vld [vmem:[%s643 + $0x139] sm:$0xff]
        %v895 = vld [vmem:[%s643 + $0x141] sm:$0xff]
        %v896 = vld [vmem:[%s643 + $0x151] sm:$0xff]
        %v897 = vld [vmem:[%s643 + $0x159] sm:$0xff]
        %v898 = vld [vmem:[%s643 + $0x169] sm:$0xff]
        %v899 = vld [vmem:[%s643 + $0x171] sm:$0xff]
        %v900 = vpack.c.bf16 %v869, %v868
        %v901 = vpack.c.bf16 %v871, %v870
        %v902 = vpack.c.bf16 %v873, %v872
        %v903 = vpack.c.bf16 %v875, %v874
        %v904 = vpack.c.bf16 %v877, %v876
        %v905 = vpack.c.bf16 %v879, %v878
        %v906 = vpack.c.bf16 %v881, %v880
        %v907 = vpack.c.bf16 %v883, %v882
        %v908 = vpack.c.bf16 %v885, %v884
        %v909 = vpack.c.bf16 %v887, %v886
        %v910 = vpack.c.bf16 %v889, %v888
        %v911 = vpack.c.bf16 %v891, %v890
        %v912 = vpack.c.bf16 %v893, %v892
        %v913 = vpack.c.bf16 %v895, %v894
        %v914 = vpack.c.bf16 %v897, %v896
        %v915 = vpack.c.bf16 %v899, %v898
        %v916 = vld [vmem:[%s643 + $0x2] sm:$0xff]
        %v917 = vld [vmem:[%s643 + $0xa] sm:$0xff]
        %v918 = vld [vmem:[%s643 + $0x1a] sm:$0xff]
        %v919 = vld [vmem:[%s643 + $0x22] sm:$0xff]
        %v920 = vld [vmem:[%s643 + $0x32] sm:$0xff]
        %v921 = vld [vmem:[%s643 + $0x3a] sm:$0xff]
        %v922 = vld [vmem:[%s643 + $0x4a] sm:$0xff]
        %v923 = vld [vmem:[%s643 + $0x52] sm:$0xff]
        %v924 = vld [vmem:[%s643 + $0x62] sm:$0xff]
        %v925 = vld [vmem:[%s643 + $0x6a] sm:$0xff]
        %v926 = vld [vmem:[%s643 + $0x7a] sm:$0xff]
        %v927 = vld [vmem:[%s643 + $0x82] sm:$0xff]
        %v928 = vld [vmem:[%s643 + $0x92] sm:$0xff]
        %v929 = vld [vmem:[%s643 + $0x9a] sm:$0xff]
        %v930 = vld [vmem:[%s643 + $0xaa] sm:$0xff]
        %v931 = vld [vmem:[%s643 + $0xb2] sm:$0xff]
        %v932 = vld [vmem:[%s643 + $0xc2] sm:$0xff]
        %v933 = vld [vmem:[%s643 + $0xca] sm:$0xff]
        %v934 = vld [vmem:[%s643 + $0xda] sm:$0xff]
        %v935 = vld [vmem:[%s643 + $0xe2] sm:$0xff]
        %v936 = vld [vmem:[%s643 + $0xf2] sm:$0xff]
        %v937 = vld [vmem:[%s643 + $0xfa] sm:$0xff]
        %v938 = vld [vmem:[%s643 + $0x10a] sm:$0xff]
        %v939 = vld [vmem:[%s643 + $0x112] sm:$0xff]
        %v940 = vld [vmem:[%s643 + $0x122] sm:$0xff]
        %v941 = vld [vmem:[%s643 + $0x12a] sm:$0xff]
        %v942 = vld [vmem:[%s643 + $0x13a] sm:$0xff]
        %v943 = vld [vmem:[%s643 + $0x142] sm:$0xff]
        %v944 = vld [vmem:[%s643 + $0x152] sm:$0xff]
        %v945 = vld [vmem:[%s643 + $0x15a] sm:$0xff]
        %v946 = vld [vmem:[%s643 + $0x16a] sm:$0xff]
        %v947 = vld [vmem:[%s643 + $0x172] sm:$0xff]
        %v948 = vpack.c.bf16 %v917, %v916
        %v949 = vpack.c.bf16 %v919, %v918
        %v950 = vpack.c.bf16 %v921, %v920
        %v951 = vpack.c.bf16 %v923, %v922
        %v952 = vpack.c.bf16 %v925, %v924
        %v953 = vpack.c.bf16 %v927, %v926
        %v954 = vpack.c.bf16 %v929, %v928
        %v955 = vpack.c.bf16 %v931, %v930
        %v956 = vpack.c.bf16 %v933, %v932
        %v957 = vpack.c.bf16 %v935, %v934
        %v958 = vpack.c.bf16 %v937, %v936
        %v959 = vpack.c.bf16 %v939, %v938
        %v960 = vpack.c.bf16 %v941, %v940
        %v961 = vpack.c.bf16 %v943, %v942
        %v962 = vpack.c.bf16 %v945, %v944
        %v963 = vpack.c.bf16 %v947, %v946
        %s964 = scalar_lea.vmem [#allocation2], 48
        %v965 = vld [vmem:[%s964] sm:$0xff]
        %v966 = vld [vmem:[%s964 + $0x8] sm:$0xff]
        %v967 = vld [vmem:[%s964 + $0x18] sm:$0xff]
        %v968 = vld [vmem:[%s964 + $0x20] sm:$0xff]
        %v969 = vld [vmem:[%s964 + $0x30] sm:$0xff]
        %v970 = vld [vmem:[%s964 + $0x38] sm:$0xff]
        %v971 = vld [vmem:[%s964 + $0x48] sm:$0xff]
        %v972 = vld [vmem:[%s964 + $0x50] sm:$0xff]
        %v973 = vld [vmem:[%s964 + $0x60] sm:$0xff]
        %v974 = vld [vmem:[%s964 + $0x68] sm:$0xff]
        %v975 = vld [vmem:[%s964 + $0x78] sm:$0xff]
        %v976 = vld [vmem:[%s964 + $0x80] sm:$0xff]
        %v977 = vld [vmem:[%s964 + $0x90] sm:$0xff]
        %v978 = vld [vmem:[%s964 + $0x98] sm:$0xff]
        %v979 = vld [vmem:[%s964 + $0xa8] sm:$0xff]
        %v980 = vld [vmem:[%s964 + $0xb0] sm:$0xff]
        %v981 = vld [vmem:[%s964 + $0xc0] sm:$0xff]
        %v982 = vld [vmem:[%s964 + $0xc8] sm:$0xff]
        %v983 = vld [vmem:[%s964 + $0xd8] sm:$0xff]
        %v984 = vld [vmem:[%s964 + $0xe0] sm:$0xff]
        %v985 = vld [vmem:[%s964 + $0xf0] sm:$0xff]
        %v986 = vld [vmem:[%s964 + $0xf8] sm:$0xff]
        %v987 = vld [vmem:[%s964 + $0x108] sm:$0xff]
        %v988 = vld [vmem:[%s964 + $0x110] sm:$0xff]
        %v989 = vld [vmem:[%s964 + $0x120] sm:$0xff]
        %v990 = vld [vmem:[%s964 + $0x128] sm:$0xff]
        %v991 = vld [vmem:[%s964 + $0x138] sm:$0xff]
        %v992 = vld [vmem:[%s964 + $0x140] sm:$0xff]
        %v993 = vld [vmem:[%s964 + $0x150] sm:$0xff]
        %v994 = vld [vmem:[%s964 + $0x158] sm:$0xff]
        %v995 = vld [vmem:[%s964 + $0x168] sm:$0xff]
        %v996 = vld [vmem:[%s964 + $0x170] sm:$0xff]
        %v997 = vpack.c.bf16 %v966, %v965
        %v998 = vpack.c.bf16 %v968, %v967
        %v999 = vpack.c.bf16 %v970, %v969
        %v1000 = vpack.c.bf16 %v972, %v971
        %v1001 = vpack.c.bf16 %v974, %v973
        %v1002 = vpack.c.bf16 %v976, %v975
        %v1003 = vpack.c.bf16 %v978, %v977
        %v1004 = vpack.c.bf16 %v980, %v979
        %v1005 = vpack.c.bf16 %v982, %v981
        %v1006 = vpack.c.bf16 %v984, %v983
        %v1007 = vpack.c.bf16 %v986, %v985
        %v1008 = vpack.c.bf16 %v988, %v987
        %v1009 = vpack.c.bf16 %v990, %v989
        %v1010 = vpack.c.bf16 %v992, %v991
        %v1011 = vpack.c.bf16 %v994, %v993
        %v1012 = vpack.c.bf16 %v996, %v995
        %v1013 = vld [vmem:[%s964 + $0x1] sm:$0xff]
        %v1014 = vld [vmem:[%s964 + $0x9] sm:$0xff]
        %v1015 = vld [vmem:[%s964 + $0x19] sm:$0xff]
        %v1016 = vld [vmem:[%s964 + $0x21] sm:$0xff]
        %v1017 = vld [vmem:[%s964 + $0x31] sm:$0xff]
        %v1018 = vld [vmem:[%s964 + $0x39] sm:$0xff]
        %v1019 = vld [vmem:[%s964 + $0x49] sm:$0xff]
        %v1020 = vld [vmem:[%s964 + $0x51] sm:$0xff]
        %v1021 = vld [vmem:[%s964 + $0x61] sm:$0xff]
        %v1022 = vld [vmem:[%s964 + $0x69] sm:$0xff]
        %v1023 = vld [vmem:[%s964 + $0x79] sm:$0xff]
        %v1024 = vld [vmem:[%s964 + $0x81] sm:$0xff]
        %v1025 = vld [vmem:[%s964 + $0x91] sm:$0xff]
        %v1026 = vld [vmem:[%s964 + $0x99] sm:$0xff]
        %v1027 = vld [vmem:[%s964 + $0xa9] sm:$0xff]
        %v1028 = vld [vmem:[%s964 + $0xb1] sm:$0xff]
        %v1029 = vld [vmem:[%s964 + $0xc1] sm:$0xff]
        %v1030 = vld [vmem:[%s964 + $0xc9] sm:$0xff]
        %v1031 = vld [vmem:[%s964 + $0xd9] sm:$0xff]
        %v1032 = vld [vmem:[%s964 + $0xe1] sm:$0xff]
        %v1033 = vld [vmem:[%s964 + $0xf1] sm:$0xff]
        %v1034 = vld [vmem:[%s964 + $0xf9] sm:$0xff]
        %v1035 = vld [vmem:[%s964 + $0x109] sm:$0xff]
        %v1036 = vld [vmem:[%s964 + $0x111] sm:$0xff]
        %v1037 = vld [vmem:[%s964 + $0x121] sm:$0xff]
        %v1038 = vld [vmem:[%s964 + $0x129] sm:$0xff]
        %v1039 = vld [vmem:[%s964 + $0x139] sm:$0xff]
        %v1040 = vld [vmem:[%s964 + $0x141] sm:$0xff]
        %v1041 = vld [vmem:[%s964 + $0x151] sm:$0xff]
        %v1042 = vld [vmem:[%s964 + $0x159] sm:$0xff]
        %v1043 = vld [vmem:[%s964 + $0x169] sm:$0xff]
        %v1044 = vld [vmem:[%s964 + $0x171] sm:$0xff]
        %v1045 = vpack.c.bf16 %v1014, %v1013
        %v1046 = vpack.c.bf16 %v1016, %v1015
        %v1047 = vpack.c.bf16 %v1018, %v1017
        %v1048 = vpack.c.bf16 %v1020, %v1019
        %v1049 = vpack.c.bf16 %v1022, %v1021
        %v1050 = vpack.c.bf16 %v1024, %v1023
        %v1051 = vpack.c.bf16 %v1026, %v1025
        %v1052 = vpack.c.bf16 %v1028, %v1027
        %v1053 = vpack.c.bf16 %v1030, %v1029
        %v1054 = vpack.c.bf16 %v1032, %v1031
        %v1055 = vpack.c.bf16 %v1034, %v1033
        %v1056 = vpack.c.bf16 %v1036, %v1035
        %v1057 = vpack.c.bf16 %v1038, %v1037
        %v1058 = vpack.c.bf16 %v1040, %v1039
        %v1059 = vpack.c.bf16 %v1042, %v1041
        %v1060 = vpack.c.bf16 %v1044, %v1043
        %v1061 = vld [vmem:[%s964 + $0x2] sm:$0xff]
        %v1062 = vld [vmem:[%s964 + $0xa] sm:$0xff]
        %v1063 = vld [vmem:[%s964 + $0x1a] sm:$0xff]
        %v1064 = vld [vmem:[%s964 + $0x22] sm:$0xff]
        %v1065 = vld [vmem:[%s964 + $0x32] sm:$0xff]
        %v1066 = vld [vmem:[%s964 + $0x3a] sm:$0xff]
        %v1067 = vld [vmem:[%s964 + $0x4a] sm:$0xff]
        %v1068 = vld [vmem:[%s964 + $0x52] sm:$0xff]
        %v1069 = vld [vmem:[%s964 + $0x62] sm:$0xff]
        %v1070 = vld [vmem:[%s964 + $0x6a] sm:$0xff]
        %v1071 = vld [vmem:[%s964 + $0x7a] sm:$0xff]
        %v1072 = vld [vmem:[%s964 + $0x82] sm:$0xff]
        %v1073 = vld [vmem:[%s964 + $0x92] sm:$0xff]
        %v1074 = vld [vmem:[%s964 + $0x9a] sm:$0xff]
        %v1075 = vld [vmem:[%s964 + $0xaa] sm:$0xff]
        %v1076 = vld [vmem:[%s964 + $0xb2] sm:$0xff]
        %v1077 = vld [vmem:[%s964 + $0xc2] sm:$0xff]
        %v1078 = vld [vmem:[%s964 + $0xca] sm:$0xff]
        %v1079 = vld [vmem:[%s964 + $0xda] sm:$0xff]
        %v1080 = vld [vmem:[%s964 + $0xe2] sm:$0xff]
        %v1081 = vld [vmem:[%s964 + $0xf2] sm:$0xff]
        %v1082 = vld [vmem:[%s964 + $0xfa] sm:$0xff]
        %v1083 = vld [vmem:[%s964 + $0x10a] sm:$0xff]
        %v1084 = vld [vmem:[%s964 + $0x112] sm:$0xff]
        %v1085 = vld [vmem:[%s964 + $0x122] sm:$0xff]
        %v1086 = vld [vmem:[%s964 + $0x12a] sm:$0xff]
        %v1087 = vld [vmem:[%s964 + $0x13a] sm:$0xff]
        %v1088 = vld [vmem:[%s964 + $0x142] sm:$0xff]
        %v1089 = vld [vmem:[%s964 + $0x152] sm:$0xff]
        %v1090 = vld [vmem:[%s964 + $0x15a] sm:$0xff]
        %v1091 = vld [vmem:[%s964 + $0x16a] sm:$0xff]
        %v1092 = vld [vmem:[%s964 + $0x172] sm:$0xff]
        %v1093 = vpack.c.bf16 %v1062, %v1061
        %v1094 = vpack.c.bf16 %v1064, %v1063
        %v1095 = vpack.c.bf16 %v1066, %v1065
        %v1096 = vpack.c.bf16 %v1068, %v1067
        %v1097 = vpack.c.bf16 %v1070, %v1069
        %v1098 = vpack.c.bf16 %v1072, %v1071
        %v1099 = vpack.c.bf16 %v1074, %v1073
        %v1100 = vpack.c.bf16 %v1076, %v1075
        %v1101 = vpack.c.bf16 %v1078, %v1077
        %v1102 = vpack.c.bf16 %v1080, %v1079
        %v1103 = vpack.c.bf16 %v1082, %v1081
        %v1104 = vpack.c.bf16 %v1084, %v1083
        %v1105 = vpack.c.bf16 %v1086, %v1085
        %v1106 = vpack.c.bf16 %v1088, %v1087
        %v1107 = vpack.c.bf16 %v1090, %v1089
        %v1108 = vpack.c.bf16 %v1092, %v1091
        %v1109 = vld [vmem:[#allocation8] sm:$0xf]
        %v1110 = vld [vmem:[#allocation8 + $0x4] sm:$0xf]
        %v1111 = vld [vmem:[#allocation8 + $0x8] sm:$0xf]
        %v1112 = vld [vmem:[#allocation8 + $0xc] sm:$0xf]
        %v1113 = vld [vmem:[#allocation8 + $0x10] sm:$0xf]
        %v1114 = vld [vmem:[#allocation8 + $0x14] sm:$0xf]
        %v1115 = vld [vmem:[#allocation8 + $0x18] sm:$0xf]
        %v1116 = vld [vmem:[#allocation8 + $0x1c] sm:$0xf]
        %v1117 = vld [vmem:[#allocation8 + $0x20] sm:$0xf]
        %v1118 = vld [vmem:[#allocation8 + $0x24] sm:$0xf]
        %v1119 = vld [vmem:[#allocation8 + $0x28] sm:$0xf]
        %v1120 = vld [vmem:[#allocation8 + $0x2c] sm:$0xf]
        %v1121 = vld [vmem:[#allocation8 + $0x30] sm:$0xf]
        %v1122 = vld [vmem:[#allocation8 + $0x34] sm:$0xf]
        %v1123 = vld [vmem:[#allocation8 + $0x38] sm:$0xf]
        %v1124 = vld [vmem:[#allocation8 + $0x3c] sm:$0xf]
        %v1125 = vld [vmem:[#allocation8 + $0x40] sm:$0xf]
        %v1126 = vld [vmem:[#allocation8 + $0x44] sm:$0xf]
        %v1127 = vld [vmem:[#allocation8 + $0x48] sm:$0xf]
        %v1128 = vld [vmem:[#allocation8 + $0x4c] sm:$0xf]
        %v1129 = vld [vmem:[#allocation8 + $0x50] sm:$0xf]
        %v1130 = vld [vmem:[#allocation8 + $0x54] sm:$0xf]
        %v1131 = vld [vmem:[#allocation8 + $0x58] sm:$0xf]
        %v1132 = vld [vmem:[#allocation8 + $0x5c] sm:$0xf]
        %v1133 = vld [vmem:[#allocation8 + $0x60] sm:$0xf]
        %v1134 = vld [vmem:[#allocation8 + $0x64] sm:$0xf]
        %v1135 = vld [vmem:[#allocation8 + $0x68] sm:$0xf]
        %v1136 = vld [vmem:[#allocation8 + $0x6c] sm:$0xf]
        %v1137 = vld [vmem:[#allocation8 + $0x70] sm:$0xf]
        %v1138 = vld [vmem:[#allocation8 + $0x74] sm:$0xf]
        %v1139 = vld [vmem:[#allocation8 + $0x78] sm:$0xf]
        %v1140 = vld [vmem:[#allocation8 + $0x7c] sm:$0xf]
        %v1141 = vld [vmem:[#allocation8 + $0x80] sm:$0xf]
        %v1142 = vld [vmem:[#allocation8 + $0x84] sm:$0xf]
        %v1143 = vld [vmem:[#allocation8 + $0x88] sm:$0xf]
        %v1144 = vld [vmem:[#allocation8 + $0x8c] sm:$0xf]
        %v1145 = vld [vmem:[#allocation8 + $0x90] sm:$0xf]
        %v1146 = vld [vmem:[#allocation8 + $0x94] sm:$0xf]
        %v1147 = vld [vmem:[#allocation8 + $0x98] sm:$0xf]
        %v1148 = vld [vmem:[#allocation8 + $0x9c] sm:$0xf]
        %v1149 = vld [vmem:[#allocation8 + $0xa0] sm:$0xf]
        %v1150 = vld [vmem:[#allocation8 + $0xa4] sm:$0xf]
        %v1151 = vld [vmem:[#allocation8 + $0xa8] sm:$0xf]
        %v1152 = vld [vmem:[#allocation8 + $0xac] sm:$0xf]
        %v1153 = vld [vmem:[#allocation8 + $0xb0] sm:$0xf]
        %v1154 = vld [vmem:[#allocation8 + $0xb4] sm:$0xf]
        %v1155 = vld [vmem:[#allocation8 + $0xb8] sm:$0xf]
        %v1156 = vld [vmem:[#allocation8 + $0xbc] sm:$0xf]
        %v1157 = vld [vmem:[#allocation8 + $0xc0] sm:$0xf]
        %v1158 = vld [vmem:[#allocation8 + $0xc4] sm:$0xf]
        %v1159 = vld [vmem:[#allocation8 + $0xc8] sm:$0xf]
        %v1160 = vld [vmem:[#allocation8 + $0xcc] sm:$0xf]
        %v1161 = vld [vmem:[#allocation8 + $0xd0] sm:$0xf]
        %v1162 = vld [vmem:[#allocation8 + $0xd4] sm:$0xf]
        %v1163 = vld [vmem:[#allocation8 + $0xd8] sm:$0xf]
        %v1164 = vld [vmem:[#allocation8 + $0xdc] sm:$0xf]
        %v1165 = vld [vmem:[#allocation8 + $0xe0] sm:$0xf]
        %v1166 = vld [vmem:[#allocation8 + $0xe4] sm:$0xf]
        %v1167 = vld [vmem:[#allocation8 + $0xe8] sm:$0xf]
        %v1168 = vld [vmem:[#allocation8 + $0xec] sm:$0xf]
        %v1169 = vld [vmem:[#allocation8 + $0xf0] sm:$0xf]
        %v1170 = vld [vmem:[#allocation8 + $0xf4] sm:$0xf]
        %v1171 = vld [vmem:[#allocation8 + $0xf8] sm:$0xf]
        %v1172 = vld [vmem:[#allocation8 + $0xfc] sm:$0xf]
        %v1173 = vld [vmem:[#allocation8 + $0x100] sm:$0xf]
        %v1174 = vld [vmem:[#allocation8 + $0x104] sm:$0xf]
        %v1175 = vld [vmem:[#allocation8 + $0x108] sm:$0xf]
        %v1176 = vld [vmem:[#allocation8 + $0x10c] sm:$0xf]
        %v1177 = vld [vmem:[#allocation8 + $0x110] sm:$0xf]
        %v1178 = vld [vmem:[#allocation8 + $0x114] sm:$0xf]
        %v1179 = vld [vmem:[#allocation8 + $0x118] sm:$0xf]
        %v1180 = vld [vmem:[#allocation8 + $0x11c] sm:$0xf]
        %v1181 = vld [vmem:[#allocation8 + $0x120] sm:$0xf]
        %v1182 = vld [vmem:[#allocation8 + $0x124] sm:$0xf]
        %v1183 = vld [vmem:[#allocation8 + $0x128] sm:$0xf]
        %v1184 = vld [vmem:[#allocation8 + $0x12c] sm:$0xf]
        %v1185 = vld [vmem:[#allocation8 + $0x130] sm:$0xf]
        %v1186 = vld [vmem:[#allocation8 + $0x134] sm:$0xf]
        %v1187 = vld [vmem:[#allocation8 + $0x138] sm:$0xf]
        %v1188 = vld [vmem:[#allocation8 + $0x13c] sm:$0xf]
        %v1189 = vld [vmem:[#allocation8 + $0x140] sm:$0xf]
        %v1190 = vld [vmem:[#allocation8 + $0x144] sm:$0xf]
        %v1191 = vld [vmem:[#allocation8 + $0x148] sm:$0xf]
        %v1192 = vld [vmem:[#allocation8 + $0x14c] sm:$0xf]
        %v1193 = vld [vmem:[#allocation8 + $0x150] sm:$0xf]
        %v1194 = vld [vmem:[#allocation8 + $0x154] sm:$0xf]
        %v1195 = vld [vmem:[#allocation8 + $0x158] sm:$0xf]
        %v1196 = vld [vmem:[#allocation8 + $0x15c] sm:$0xf]
        %v1197 = vld [vmem:[#allocation8 + $0x160] sm:$0xf]
        %v1198 = vld [vmem:[#allocation8 + $0x164] sm:$0xf]
        %v1199 = vld [vmem:[#allocation8 + $0x168] sm:$0xf]
        %v1200 = vld [vmem:[#allocation8 + $0x16c] sm:$0xf]
        %v1201 = vld [vmem:[#allocation8 + $0x170] sm:$0xf]
        %v1202 = vld [vmem:[#allocation8 + $0x174] sm:$0xf]
        %v1203 = vld [vmem:[#allocation8 + $0x178] sm:$0xf]
        %v1204 = vld [vmem:[#allocation8 + $0x17c] sm:$0xf]
        %v1205 = vld [vmem:[#allocation8 + $0x180] sm:$0xf]
        %v1206 = vld [vmem:[#allocation8 + $0x184] sm:$0xf]
        %v1207 = vld [vmem:[#allocation8 + $0x188] sm:$0xf]
        %v1208 = vld [vmem:[#allocation8 + $0x18c] sm:$0xf]
        %v1209 = vld [vmem:[#allocation8 + $0x190] sm:$0xf]
        %v1210 = vld [vmem:[#allocation8 + $0x194] sm:$0xf]
        %v1211 = vld [vmem:[#allocation8 + $0x198] sm:$0xf]
        %v1212 = vld [vmem:[#allocation8 + $0x19c] sm:$0xf]
        %v1213 = vld [vmem:[#allocation8 + $0x1a0] sm:$0xf]
        %v1214 = vld [vmem:[#allocation8 + $0x1a4] sm:$0xf]
        %v1215 = vld [vmem:[#allocation8 + $0x1a8] sm:$0xf]
        %v1216 = vld [vmem:[#allocation8 + $0x1ac] sm:$0xf]
        %v1217 = vld [vmem:[#allocation8 + $0x1b0] sm:$0xf]
        %v1218 = vld [vmem:[#allocation8 + $0x1b4] sm:$0xf]
        %v1219 = vld [vmem:[#allocation8 + $0x1b8] sm:$0xf]
        %v1220 = vld [vmem:[#allocation8 + $0x1bc] sm:$0xf]
        %v1221 = vld [vmem:[#allocation8 + $0x1c0] sm:$0xf]
        %v1222 = vld [vmem:[#allocation8 + $0x1c4] sm:$0xf]
        %v1223 = vld [vmem:[#allocation8 + $0x1c8] sm:$0xf]
        %v1224 = vld [vmem:[#allocation8 + $0x1cc] sm:$0xf]
        %v1225 = vld [vmem:[#allocation8 + $0x1d0] sm:$0xf]
        %v1226 = vld [vmem:[#allocation8 + $0x1d4] sm:$0xf]
        %v1227 = vld [vmem:[#allocation8 + $0x1d8] sm:$0xf]
        %v1228 = vld [vmem:[#allocation8 + $0x1dc] sm:$0xf]
        %v1229 = vld [vmem:[#allocation8 + $0x1e0] sm:$0xf]
        %v1230 = vld [vmem:[#allocation8 + $0x1e4] sm:$0xf]
        %v1231 = vld [vmem:[#allocation8 + $0x1e8] sm:$0xf]
        %v1232 = vld [vmem:[#allocation8 + $0x1ec] sm:$0xf]
        %v1233 = vld [vmem:[#allocation8 + $0x1f0] sm:$0xf]
        %v1234 = vld [vmem:[#allocation8 + $0x1f4] sm:$0xf]
        %v1235 = vld [vmem:[#allocation8 + $0x1f8] sm:$0xf]
        %v1236 = vld [vmem:[#allocation8 + $0x1fc] sm:$0xf]
        %v1237 = vld [vmem:[#allocation8 + $0x200] sm:$0xf]
        %v1238 = vld [vmem:[#allocation8 + $0x204] sm:$0xf]
        %v1239 = vld [vmem:[#allocation8 + $0x208] sm:$0xf]
        %v1240 = vld [vmem:[#allocation8 + $0x20c] sm:$0xf]
        %v1241 = vld [vmem:[#allocation8 + $0x210] sm:$0xf]
        %v1242 = vld [vmem:[#allocation8 + $0x214] sm:$0xf]
        %v1243 = vld [vmem:[#allocation8 + $0x218] sm:$0xf]
        %v1244 = vld [vmem:[#allocation8 + $0x21c] sm:$0xf]
        %v1245 = vld [vmem:[#allocation8 + $0x220] sm:$0xf]
        %v1246 = vld [vmem:[#allocation8 + $0x224] sm:$0xf]
        %v1247 = vld [vmem:[#allocation8 + $0x228] sm:$0xf]
        %v1248 = vld [vmem:[#allocation8 + $0x22c] sm:$0xf]
        %v1249 = vld [vmem:[#allocation8 + $0x230] sm:$0xf]
        %v1250 = vld [vmem:[#allocation8 + $0x234] sm:$0xf]
        %v1251 = vld [vmem:[#allocation8 + $0x238] sm:$0xf]
        %v1252 = vld [vmem:[#allocation8 + $0x23c] sm:$0xf]
        %v1253 = vld [vmem:[%s4] sm:$0x1]
        %v1255 = vlaneseq
        %v1256 = vshrl.u32 %v1255, 7
        %v1257 = vsub.s32 0, %v1256
        %v1258 = vrot.slane %v1253, %v1257
        %v1404 = vunpack.c.l.b16 %v1109
        %v1405 = vunpack.c.l.b16 %v1110
        %v1406 = vunpack.c.l.b16 %v1111
        %v1407 = vunpack.c.l.b16 %v1112
        %v1408 = vunpack.c.l.b16 %v1113
        %v1409 = vunpack.c.l.b16 %v1114
        %v1410 = vunpack.c.l.b16 %v1115
        %v1411 = vunpack.c.l.b16 %v1116
        %v1412 = vunpack.c.l.b16 %v1117
        %v1413 = vunpack.c.l.b16 %v1118
        %v1414 = vunpack.c.l.b16 %v1119
        %v1415 = vunpack.c.l.b16 %v1120
        %v1416 = vunpack.c.l.b16 %v1121
        %v1417 = vunpack.c.l.b16 %v1122
        %v1418 = vunpack.c.l.b16 %v1123
        %v1419 = vunpack.c.l.b16 %v1124
        %v1420 = vunpack.c.l.b16 %v1125
        %v1421 = vunpack.c.l.b16 %v1126
        %v1422 = vunpack.c.l.b16 %v1127
        %v1423 = vunpack.c.l.b16 %v1128
        %v1424 = vunpack.c.l.b16 %v1129
        %v1425 = vunpack.c.l.b16 %v1130
        %v1426 = vunpack.c.l.b16 %v1131
        %v1427 = vunpack.c.l.b16 %v1132
        %v1428 = vunpack.c.l.b16 %v1133
        %v1429 = vunpack.c.l.b16 %v1134
        %v1430 = vunpack.c.l.b16 %v1135
        %v1431 = vunpack.c.l.b16 %v1136
        %v1432 = vunpack.c.l.b16 %v1137
        %v1433 = vunpack.c.l.b16 %v1138
        %v1434 = vunpack.c.l.b16 %v1139
        %v1435 = vunpack.c.l.b16 %v1140
        %v1436 = vunpack.c.l.b16 %v1141
        %v1437 = vunpack.c.l.b16 %v1142
        %v1438 = vunpack.c.l.b16 %v1143
        %v1439 = vunpack.c.l.b16 %v1144
        %v1440 = vunpack.c.l.b16 %v1145
        %v1441 = vunpack.c.l.b16 %v1146
        %v1442 = vunpack.c.l.b16 %v1147
        %v1443 = vunpack.c.l.b16 %v1148
        %v1444 = vunpack.c.l.b16 %v1149
        %v1445 = vunpack.c.l.b16 %v1150
        %v1446 = vunpack.c.l.b16 %v1151
        %v1447 = vunpack.c.l.b16 %v1152
        %v1448 = vunpack.c.l.b16 %v1153
        %v1449 = vunpack.c.l.b16 %v1154
        %v1450 = vunpack.c.l.b16 %v1155
        %v1451 = vunpack.c.l.b16 %v1156
        %v1452 = vunpack.c.l.b16 %v1157
        %v1453 = vunpack.c.l.b16 %v1158
        %v1454 = vunpack.c.l.b16 %v1159
        %v1455 = vunpack.c.l.b16 %v1160
        %v1456 = vunpack.c.l.b16 %v1161
        %v1457 = vunpack.c.l.b16 %v1162
        %v1458 = vunpack.c.l.b16 %v1163
        %v1459 = vunpack.c.l.b16 %v1164
        %v1460 = vunpack.c.l.b16 %v1165
        %v1461 = vunpack.c.l.b16 %v1166
        %v1462 = vunpack.c.l.b16 %v1167
        %v1463 = vunpack.c.l.b16 %v1168
        %v1464 = vunpack.c.l.b16 %v1169
        %v1465 = vunpack.c.l.b16 %v1170
        %v1466 = vunpack.c.l.b16 %v1171
        %v1467 = vunpack.c.l.b16 %v1172
        %v1468 = vunpack.c.l.b16 %v1173
        %v1469 = vunpack.c.l.b16 %v1174
        %v1470 = vunpack.c.l.b16 %v1175
        %v1471 = vunpack.c.l.b16 %v1176
        %v1472 = vunpack.c.l.b16 %v1177
        %v1473 = vunpack.c.l.b16 %v1178
        %v1474 = vunpack.c.l.b16 %v1179
        %v1475 = vunpack.c.l.b16 %v1180
        %v1476 = vunpack.c.l.b16 %v1181
        %v1477 = vunpack.c.l.b16 %v1182
        %v1478 = vunpack.c.l.b16 %v1183
        %v1479 = vunpack.c.l.b16 %v1184
        %v1480 = vunpack.c.l.b16 %v1185
        %v1481 = vunpack.c.l.b16 %v1186
        %v1482 = vunpack.c.l.b16 %v1187
        %v1483 = vunpack.c.l.b16 %v1188
        %v1484 = vunpack.c.l.b16 %v1189
        %v1485 = vunpack.c.l.b16 %v1190
        %v1486 = vunpack.c.l.b16 %v1191
        %v1487 = vunpack.c.l.b16 %v1192
        %v1488 = vunpack.c.l.b16 %v1193
        %v1489 = vunpack.c.l.b16 %v1194
        %v1490 = vunpack.c.l.b16 %v1195
        %v1491 = vunpack.c.l.b16 %v1196
        %v1492 = vunpack.c.l.b16 %v1197
        %v1493 = vunpack.c.l.b16 %v1198
        %v1494 = vunpack.c.l.b16 %v1199
        %v1495 = vunpack.c.l.b16 %v1200
        %v1496 = vunpack.c.l.b16 %v1201
        %v1497 = vunpack.c.l.b16 %v1202
        %v1498 = vunpack.c.l.b16 %v1203
        %v1499 = vunpack.c.l.b16 %v1204
        %v1500 = vunpack.c.l.b16 %v1205
        %v1501 = vunpack.c.l.b16 %v1206
        %v1502 = vunpack.c.l.b16 %v1207
        %v1503 = vunpack.c.l.b16 %v1208
        %v1504 = vunpack.c.l.b16 %v1209
        %v1505 = vunpack.c.l.b16 %v1210
        %v1506 = vunpack.c.l.b16 %v1211
        %v1507 = vunpack.c.l.b16 %v1212
        %v1508 = vunpack.c.l.b16 %v1213
        %v1509 = vunpack.c.l.b16 %v1214
        %v1510 = vunpack.c.l.b16 %v1215
        %v1511 = vunpack.c.l.b16 %v1216
        %v1512 = vunpack.c.l.b16 %v1217
        %v1513 = vunpack.c.l.b16 %v1218
        %v1514 = vunpack.c.l.b16 %v1219
        %v1515 = vunpack.c.l.b16 %v1220
        %v1516 = vunpack.c.l.b16 %v1221
        %v1517 = vunpack.c.l.b16 %v1222
        %v1518 = vunpack.c.l.b16 %v1223
        %v1519 = vunpack.c.l.b16 %v1224
        %v1520 = vunpack.c.l.b16 %v1225
        %v1521 = vunpack.c.l.b16 %v1226
        %v1522 = vunpack.c.l.b16 %v1227
        %v1523 = vunpack.c.l.b16 %v1228
        %v1524 = vunpack.c.l.b16 %v1229
        %v1525 = vunpack.c.l.b16 %v1230
        %v1526 = vunpack.c.l.b16 %v1231
        %v1527 = vunpack.c.l.b16 %v1232
        %v1528 = vunpack.c.l.b16 %v1233
        %v1529 = vunpack.c.l.b16 %v1234
        %v1530 = vunpack.c.l.b16 %v1235
        %v1531 = vunpack.c.l.b16 %v1236
        %v1532 = vunpack.c.l.b16 %v1237
        %v1533 = vunpack.c.l.b16 %v1238
        %v1534 = vunpack.c.l.b16 %v1239
        %v1535 = vunpack.c.l.b16 %v1240
        %v1536 = vunpack.c.l.b16 %v1241
        %v1537 = vunpack.c.l.b16 %v1242
        %v1538 = vunpack.c.l.b16 %v1243
        %v1539 = vunpack.c.l.b16 %v1244
        %v1540 = vunpack.c.l.b16 %v1245
        %v1541 = vunpack.c.l.b16 %v1246
        %v1542 = vunpack.c.l.b16 %v1247
        %v1543 = vunpack.c.l.b16 %v1248
        %v1544 = vunpack.c.l.b16 %v1249
        %v1545 = vunpack.c.l.b16 %v1250
        %v1546 = vunpack.c.l.b16 %v1251
        %v1547 = vunpack.c.l.b16 %v1252
        %v1548 = vpack.c.b16 %v1405, %v1404
        %v1549 = vpack.c.b16 %v1407, %v1406
        %v1550 = vpack.c.b16 %v1409, %v1408
        %v1551 = vpack.c.b16 %v1411, %v1410
        %v1552 = vpack.c.b16 %v1413, %v1412
        %v1553 = vpack.c.b16 %v1415, %v1414
        %v1554 = vpack.c.b16 %v1417, %v1416
        %v1555 = vpack.c.b16 %v1419, %v1418
        %v1556 = vpack.c.b16 %v1421, %v1420
        %v1557 = vpack.c.b16 %v1423, %v1422
        %v1558 = vpack.c.b16 %v1425, %v1424
        %v1559 = vpack.c.b16 %v1427, %v1426
        %v1560 = vpack.c.b16 %v1429, %v1428
        %v1561 = vpack.c.b16 %v1431, %v1430
        %v1562 = vpack.c.b16 %v1433, %v1432
        %v1563 = vpack.c.b16 %v1435, %v1434
        %v1564 = vpack.c.b16 %v1437, %v1436
        %v1565 = vpack.c.b16 %v1439, %v1438
        %v1566 = vpack.c.b16 %v1441, %v1440
        %v1567 = vpack.c.b16 %v1443, %v1442
        %v1568 = vpack.c.b16 %v1445, %v1444
        %v1569 = vpack.c.b16 %v1447, %v1446
        %v1570 = vpack.c.b16 %v1449, %v1448
        %v1571 = vpack.c.b16 %v1451, %v1450
        %v1572 = vpack.c.b16 %v1453, %v1452
        %v1573 = vpack.c.b16 %v1455, %v1454
        %v1574 = vpack.c.b16 %v1457, %v1456
        %v1575 = vpack.c.b16 %v1459, %v1458
        %v1576 = vpack.c.b16 %v1461, %v1460
        %v1577 = vpack.c.b16 %v1463, %v1462
        %v1578 = vpack.c.b16 %v1465, %v1464
        %v1579 = vpack.c.b16 %v1467, %v1466
        %v1580 = vpack.c.b16 %v1469, %v1468
        %v1581 = vpack.c.b16 %v1471, %v1470
        %v1582 = vpack.c.b16 %v1473, %v1472
        %v1583 = vpack.c.b16 %v1475, %v1474
        %v1584 = vpack.c.b16 %v1477, %v1476
        %v1585 = vpack.c.b16 %v1479, %v1478
        %v1586 = vpack.c.b16 %v1481, %v1480
        %v1587 = vpack.c.b16 %v1483, %v1482
        %v1588 = vpack.c.b16 %v1485, %v1484
        %v1589 = vpack.c.b16 %v1487, %v1486
        %v1590 = vpack.c.b16 %v1489, %v1488
        %v1591 = vpack.c.b16 %v1491, %v1490
        %v1592 = vpack.c.b16 %v1493, %v1492
        %v1593 = vpack.c.b16 %v1495, %v1494
        %v1594 = vpack.c.b16 %v1497, %v1496
        %v1595 = vpack.c.b16 %v1499, %v1498
        %v1596 = vpack.c.b16 %v1501, %v1500
        %v1597 = vpack.c.b16 %v1503, %v1502
        %v1598 = vpack.c.b16 %v1505, %v1504
        %v1599 = vpack.c.b16 %v1507, %v1506
        %v1600 = vpack.c.b16 %v1509, %v1508
        %v1601 = vpack.c.b16 %v1511, %v1510
        %v1602 = vpack.c.b16 %v1513, %v1512
        %v1603 = vpack.c.b16 %v1515, %v1514
        %v1604 = vpack.c.b16 %v1517, %v1516
        %v1605 = vpack.c.b16 %v1519, %v1518
        %v1606 = vpack.c.b16 %v1521, %v1520
        %v1607 = vpack.c.b16 %v1523, %v1522
        %v1608 = vpack.c.b16 %v1525, %v1524
        %v1609 = vpack.c.b16 %v1527, %v1526
        %v1610 = vpack.c.b16 %v1529, %v1528
        %v1611 = vpack.c.b16 %v1531, %v1530
        %v1612 = vpack.c.b16 %v1533, %v1532
        %v1613 = vpack.c.b16 %v1535, %v1534
        %v1614 = vpack.c.b16 %v1537, %v1536
        %v1615 = vpack.c.b16 %v1539, %v1538
        %v1616 = vpack.c.b16 %v1541, %v1540
        %v1617 = vpack.c.b16 %v1543, %v1542
        %v1618 = vpack.c.b16 %v1545, %v1544
        %v1619 = vpack.c.b16 %v1547, %v1546
        %1692 = vmatprep.subr.bf16.mxu0 0
        %1693 = vmatpush1.bf16.msra.mxu0 %v1548
        %1694 = vmatprep.subr.bf16.mxu0 0
        %1695 = vmatpush1.bf16.msra.mxu0 %v1549
        %1696 = vmatprep.subr.bf16.mxu0 0
        %1697 = vmatpush1.bf16.msra.mxu0 %v1550
        %1698 = vmatprep.subr.bf16.mxu0 0
        %1699 = vmatpush1.bf16.msra.mxu0 %v1551
        %1700 = vmatprep.subr.bf16.mxu0 0
        %1701 = vmatpush1.bf16.msra.mxu0 %v1552
        %1702 = vmatprep.subr.bf16.mxu0 0
        %1703 = vmatpush1.bf16.msra.mxu0 %v1553
        %1704 = vmatprep.subr.bf16.mxu0 0
        %1705 = vmatpush1.bf16.msra.mxu0 %v1554
        %1706 = vmatprep.subr.bf16.mxu0 0
        %1707 = vmatpush1.bf16.msra.mxu0 %v1555
        %1708 = vmatprep.subr.bf16.mxu0 0
        %1709 = vmatpush1.bf16.msra.mxu0 %v1556
        %1710 = vmatprep.subr.bf16.mxu0 0
        %1711 = vmatpush1.bf16.msra.mxu0 %v1557
        %1712 = vmatprep.subr.bf16.mxu0 0
        %1713 = vmatpush1.bf16.msra.mxu0 %v1558
        %1714 = vmatprep.subr.bf16.mxu0 0
        %1715 = vmatpush1.bf16.msra.mxu0 %v1559
        %1716 = vmatprep.subr.bf16.mxu0 0
        %1717 = vmatpush1.bf16.msra.mxu0 %v1560
        %1718 = vmatprep.subr.bf16.mxu0 0
        %1719 = vmatpush1.bf16.msra.mxu0 %v1561
        %1720 = vmatprep.subr.bf16.mxu0 0
        %1721 = vmatpush1.bf16.msra.mxu0 %v1562
        %1722 = vmatprep.subr.bf16.mxu0 0
        %1723 = vmatpush1.bf16.msra.mxu0 %v1563
        %1724 = vmatprep.mubr.bf16.mxu0 %v756
        %1725 = vmatmul.mubr.bf16.gmra.mrb[0].mxu0 %v708
        %v1726 = vpop.f32.mrb[0].mxu0
        %v1727 = vadd.f32 %v1258, %v1726
        %v1728 = vpop.f32.mrb[0].mxu0
        %v1729 = vpop.f32.mrb[0].mxu0
        %v1730 = vadd.f32 %v1258, %v1729
        %v1731 = vpop.f32.mrb[0].mxu0
        %1732 = vmatprep.mubr.bf16.mxu0 %v757
        %1733 = vmatmul.mubr.bf16.gmra.mrb[0].mxu0 %v709
        %v1734 = vpop.f32.mrb[0].mxu0
        %v1735 = vadd.f32 %v1258, %v1734
        %v1736 = vpop.f32.mrb[0].mxu0
        %v1737 = vpop.f32.mrb[0].mxu0
        %v1738 = vadd.f32 %v1258, %v1737
        %v1739 = vpop.f32.mrb[0].mxu0
        %1740 = vmatprep.mubr.bf16.mxu0 %v758
        %1741 = vmatmul.mubr.bf16.gmra.mrb[0].mxu0 %v710
        %v1742 = vpop.f32.mrb[0].mxu0
        %v1743 = vadd.f32 %v1258, %v1742
        %v1744 = vpop.f32.mrb[0].mxu0
        %v1745 = vpop.f32.mrb[0].mxu0
        %v1746 = vadd.f32 %v1258, %v1745
        %v1747 = vpop.f32.mrb[0].mxu0
        %1748 = vmatprep.mubr.bf16.mxu0 %v759
        %1749 = vmatmul.mubr.bf16.gmra.mrb[0].mxu0 %v711
        %v1750 = vpop.f32.mrb[0].mxu0
        %v1751 = vadd.f32 %v1258, %v1750
        %v1752 = vpop.f32.mrb[0].mxu0
        %v1753 = vpop.f32.mrb[0].mxu0
        %v1754 = vadd.f32 %v1258, %v1753
        %v1755 = vpop.f32.mrb[0].mxu0
        %1756 = vmatprep.mubr.bf16.mxu0 %v760
        %1757 = vmatmul.mubr.bf16.gmra.mrb[0].mxu0 %v712
        %v1758 = vpop.f32.mrb[0].mxu0
        %v1759 = vadd.f32 %v1258, %v1758
        %v1760 = vpop.f32.mrb[0].mxu0
        %v1761 = vpop.f32.mrb[0].mxu0
        %v1762 = vadd.f32 %v1258, %v1761
        %v1763 = vpop.f32.mrb[0].mxu0
        %1764 = vmatprep.mubr.bf16.mxu0 %v761
        %1765 = vmatmul.mubr.bf16.gmra.mrb[0].mxu0 %v713
        %v1766 = vpop.f32.mrb[0].mxu0
        %v1767 = vadd.f32 %v1258, %v1766
        %v1768 = vpop.f32.mrb[0].mxu0
        %v1769 = vpop.f32.mrb[0].mxu0
        %v1770 = vadd.f32 %v1258, %v1769
        %v1771 = vpop.f32.mrb[0].mxu0
        %1772 = vmatprep.mubr.bf16.mxu0 %v762
        %1773 = vmatmul.mubr.bf16.gmra.mrb[0].mxu0 %v714
        %v1774 = vpop.f32.mrb[0].mxu0
        %v1775 = vadd.f32 %v1258, %v1774
        %v1776 = vpop.f32.mrb[0].mxu0
        %v1777 = vpop.f32.mrb[0].mxu0
        %v1778 = vadd.f32 %v1258, %v1777
        %v1779 = vpop.f32.mrb[0].mxu0
        %1780 = vmatprep.mubr.bf16.mxu0 %v763
        %1781 = vmatmul.mubr.bf16.gmra.mrb[0].mxu0 %v715
        %v1782 = vpop.f32.mrb[0].mxu0
        %v1783 = vadd.f32 %v1258, %v1782
        %v1784 = vpop.f32.mrb[0].mxu0
        %v1785 = vpop.f32.mrb[0].mxu0
        %v1786 = vadd.f32 %v1258, %v1785
        %v1787 = vpop.f32.mrb[0].mxu0
        %1788 = vmatprep.mubr.bf16.mxu0 %v764
        %1789 = vmatmul.mubr.bf16.gmra.mrb[0].mxu0 %v716
        %v1790 = vpop.f32.mrb[0].mxu0
        %v1791 = vadd.f32 %v1258, %v1790
        %v1792 = vpop.f32.mrb[0].mxu0
        %v1793 = vpop.f32.mrb[0].mxu0
        %v1794 = vadd.f32 %v1258, %v1793
        %v1795 = vpop.f32.mrb[0].mxu0
        %1796 = vmatprep.mubr.bf16.mxu0 %v765
        %1797 = vmatmul.mubr.bf16.gmra.mrb[0].mxu0 %v717
        %v1798 = vpop.f32.mrb[0].mxu0
        %v1799 = vadd.f32 %v1258, %v1798
        %v1800 = vpop.f32.mrb[0].mxu0
        %v1801 = vpop.f32.mrb[0].mxu0
        %v1802 = vadd.f32 %v1258, %v1801
        %v1803 = vpop.f32.mrb[0].mxu0
        %1804 = vmatprep.mubr.bf16.mxu0 %v766
        %1805 = vmatmul.mubr.bf16.gmra.mrb[0].mxu0 %v718
        %v1806 = vpop.f32.mrb[0].mxu0
        %v1807 = vadd.f32 %v1258, %v1806
        %v1808 = vpop.f32.mrb[0].mxu0
        %v1809 = vpop.f32.mrb[0].mxu0
        %v1810 = vadd.f32 %v1258, %v1809
        %v1811 = vpop.f32.mrb[0].mxu0
        %1812 = vmatprep.mubr.bf16.mxu0 %v767
        %1813 = vmatmul.mubr.bf16.gmra.mrb[0].mxu0 %v719
        %v1814 = vpop.f32.mrb[0].mxu0
        %v1815 = vadd.f32 %v1258, %v1814
        %v1816 = vpop.f32.mrb[0].mxu0
        %v1817 = vpop.f32.mrb[0].mxu0
        %v1818 = vadd.f32 %v1258, %v1817
        %v1819 = vpop.f32.mrb[0].mxu0
        %1820 = vmatprep.mubr.bf16.mxu0 %v768
        %1821 = vmatmul.mubr.bf16.gmra.mrb[0].mxu0 %v720
        %v1822 = vpop.f32.mrb[0].mxu0
        %v1823 = vadd.f32 %v1258, %v1822
        %v1824 = vpop.f32.mrb[0].mxu0
        %v1825 = vpop.f32.mrb[0].mxu0
        %v1826 = vadd.f32 %v1258, %v1825
        %v1827 = vpop.f32.mrb[0].mxu0
        %1828 = vmatprep.mubr.bf16.mxu0 %v769
        %1829 = vmatmul.mubr.bf16.gmra.mrb[0].mxu0 %v721
        %v1830 = vpop.f32.mrb[0].mxu0
        %v1831 = vadd.f32 %v1258, %v1830
        %v1832 = vpop.f32.mrb[0].mxu0
        %v1833 = vpop.f32.mrb[0].mxu0
        %v1834 = vadd.f32 %v1258, %v1833
        %v1835 = vpop.f32.mrb[0].mxu0
        %1836 = vmatprep.mubr.bf16.mxu0 %v770
        %1837 = vmatmul.mubr.bf16.gmra.mrb[0].mxu0 %v722
        %v1838 = vpop.f32.mrb[0].mxu0
        %v1839 = vadd.f32 %v1258, %v1838
        %v1840 = vpop.f32.mrb[0].mxu0
        %v1841 = vpop.f32.mrb[0].mxu0
        %v1842 = vadd.f32 %v1258, %v1841
        %v1843 = vpop.f32.mrb[0].mxu0
        %1844 = vmatprep.mubr.bf16.mxu0 %v771
        %1845 = vmatmul.mubr.bf16.gmra.mrb[0].mxu0 %v723
        %v1846 = vpop.f32.mrb[0].mxu0
        %v1847 = vadd.f32 %v1258, %v1846
        %v1848 = vpop.f32.mrb[0].mxu0
        %v1849 = vpop.f32.mrb[0].mxu0
        %v1850 = vadd.f32 %v1258, %v1849
        %v1851 = vpop.f32.mrb[0].mxu0
        %1852 = vdwg.mxu0
        %1853 = vmatprep.subr.bf16.mxu0 0
        %1854 = vmatpush1.bf16.msra.mxu0 %v1564
        %1855 = vmatprep.subr.bf16.mxu0 0
        %1856 = vmatpush1.bf16.msra.mxu0 %v1565
        %1857 = vmatprep.subr.bf16.mxu0 0
        %1858 = vmatpush1.bf16.msra.mxu0 %v1566
        %1859 = vmatprep.subr.bf16.mxu0 0
        %1860 = vmatpush1.bf16.msra.mxu0 %v1567
        %1861 = vmatprep.subr.bf16.mxu0 0
        %1862 = vmatpush1.bf16.msra.mxu0 %v1568
        %1863 = vmatprep.subr.bf16.mxu0 0
        %1864 = vmatpush1.bf16.msra.mxu0 %v1569
        %1865 = vmatprep.subr.bf16.mxu0 0
        %1866 = vmatpush1.bf16.msra.mxu0 %v1570
        %1867 = vmatprep.subr.bf16.mxu0 0
        %1868 = vmatpush1.bf16.msra.mxu0 %v1571
        %1869 = vmatprep.subr.bf16.mxu0 0
        %1870 = vmatpush1.bf16.msra.mxu0 %v1572
        %1871 = vmatprep.subr.bf16.mxu0 0
        %1872 = vmatpush1.bf16.msra.mxu0 %v1573
        %1873 = vmatprep.subr.bf16.mxu0 0
        %1874 = vmatpush1.bf16.msra.mxu0 %v1574
        %1875 = vmatprep.subr.bf16.mxu0 0
        %1876 = vmatpush1.bf16.msra.mxu0 %v1575
        %1877 = vmatprep.subr.bf16.mxu0 0
        %1878 = vmatpush1.bf16.msra.mxu0 %v1576
        %1879 = vmatprep.subr.bf16.mxu0 0
        %1880 = vmatpush1.bf16.msra.mxu0 %v1577
        %1881 = vmatprep.subr.bf16.mxu0 0
        %1882 = vmatpush1.bf16.msra.mxu0 %v1578
        %1883 = vmatprep.subr.bf16.mxu0 0
        %1884 = vmatpush1.bf16.msra.mxu0 %v1579
        %1885 = vmatprep.mubr.bf16.mxu0 %v852
        %1886 = vmatmul.mubr.bf16.gmra.mrb[0].mxu0 %v804
        %v1887 = vpop.f32.mrb[0].mxu0
        %v1888 = vadd.f32 %v1727, %v1887
        %v1889 = vpop.f32.mrb[0].mxu0
        %v1890 = vpop.f32.mrb[0].mxu0
        %v1891 = vadd.f32 %v1730, %v1890
        %v1892 = vpop.f32.mrb[0].mxu0
        %1893 = vmatprep.mubr.bf16.mxu0 %v853
        %1894 = vmatmul.mubr.bf16.gmra.mrb[0].mxu0 %v805
        %v1895 = vpop.f32.mrb[0].mxu0
        %v1896 = vadd.f32 %v1735, %v1895
        %v1897 = vpop.f32.mrb[0].mxu0
        %v1898 = vpop.f32.mrb[0].mxu0
        %v1899 = vadd.f32 %v1738, %v1898
        %v1900 = vpop.f32.mrb[0].mxu0
        %1901 = vmatprep.mubr.bf16.mxu0 %v854
        %1902 = vmatmul.mubr.bf16.gmra.mrb[0].mxu0 %v806
        %v1903 = vpop.f32.mrb[0].mxu0
        %v1904 = vadd.f32 %v1743, %v1903
        %v1905 = vpop.f32.mrb[0].mxu0
        %v1906 = vpop.f32.mrb[0].mxu0
        %v1907 = vadd.f32 %v1746, %v1906
        %v1908 = vpop.f32.mrb[0].mxu0
        %1909 = vmatprep.mubr.bf16.mxu0 %v855
        %1910 = vmatmul.mubr.bf16.gmra.mrb[0].mxu0 %v807
        %v1911 = vpop.f32.mrb[0].mxu0
        %v1912 = vadd.f32 %v1751, %v1911
        %v1913 = vpop.f32.mrb[0].mxu0
        %v1914 = vpop.f32.mrb[0].mxu0
        %v1915 = vadd.f32 %v1754, %v1914
        %v1916 = vpop.f32.mrb[0].mxu0
        %1917 = vmatprep.mubr.bf16.mxu0 %v856
        %1918 = vmatmul.mubr.bf16.gmra.mrb[0].mxu0 %v808
        %v1919 = vpop.f32.mrb[0].mxu0
        %v1920 = vadd.f32 %v1759, %v1919
        %v1921 = vpop.f32.mrb[0].mxu0
        %v1922 = vpop.f32.mrb[0].mxu0
        %v1923 = vadd.f32 %v1762, %v1922
        %v1924 = vpop.f32.mrb[0].mxu0
        %1925 = vmatprep.mubr.bf16.mxu0 %v857
        %1926 = vmatmul.mubr.bf16.gmra.mrb[0].mxu0 %v809
        %v1927 = vpop.f32.mrb[0].mxu0
        %v1928 = vadd.f32 %v1767, %v1927
        %v1929 = vpop.f32.mrb[0].mxu0
        %v1930 = vpop.f32.mrb[0].mxu0
        %v1931 = vadd.f32 %v1770, %v1930
        %v1932 = vpop.f32.mrb[0].mxu0
        %1933 = vmatprep.mubr.bf16.mxu0 %v858
        %1934 = vmatmul.mubr.bf16.gmra.mrb[0].mxu0 %v810
        %v1935 = vpop.f32.mrb[0].mxu0
        %v1936 = vadd.f32 %v1775, %v1935
        %v1937 = vpop.f32.mrb[0].mxu0
        %v1938 = vpop.f32.mrb[0].mxu0
        %v1939 = vadd.f32 %v1778, %v1938
        %v1940 = vpop.f32.mrb[0].mxu0
        %1941 = vmatprep.mubr.bf16.mxu0 %v859
        %1942 = vmatmul.mubr.bf16.gmra.mrb[0].mxu0 %v811
        %v1943 = vpop.f32.mrb[0].mxu0
        %v1944 = vadd.f32 %v1783, %v1943
        %v1945 = vpop.f32.mrb[0].mxu0
        %v1946 = vpop.f32.mrb[0].mxu0
        %v1947 = vadd.f32 %v1786, %v1946
        %v1948 = vpop.f32.mrb[0].mxu0
        %1949 = vmatprep.mubr.bf16.mxu0 %v860
        %1950 = vmatmul.mubr.bf16.gmra.mrb[0].mxu0 %v812
        %v1951 = vpop.f32.mrb[0].mxu0
        %v1952 = vadd.f32 %v1791, %v1951
        %v1953 = vpop.f32.mrb[0].mxu0
        %v1954 = vpop.f32.mrb[0].mxu0
        %v1955 = vadd.f32 %v1794, %v1954
        %v1956 = vpop.f32.mrb[0].mxu0
        %1957 = vmatprep.mubr.bf16.mxu0 %v861
        %1958 = vmatmul.mubr.bf16.gmra.mrb[0].mxu0 %v813
        %v1959 = vpop.f32.mrb[0].mxu0
        %v1960 = vadd.f32 %v1799, %v1959
        %v1961 = vpop.f32.mrb[0].mxu0
        %v1962 = vpop.f32.mrb[0].mxu0
        %v1963 = vadd.f32 %v1802, %v1962
        %v1964 = vpop.f32.mrb[0].mxu0
        %1965 = vmatprep.mubr.bf16.mxu0 %v862
        %1966 = vmatmul.mubr.bf16.gmra.mrb[0].mxu0 %v814
        %v1967 = vpop.f32.mrb[0].mxu0
        %v1968 = vadd.f32 %v1807, %v1967
        %v1969 = vpop.f32.mrb[0].mxu0
        %v1970 = vpop.f32.mrb[0].mxu0
        %v1971 = vadd.f32 %v1810, %v1970
        %v1972 = vpop.f32.mrb[0].mxu0
        %1973 = vmatprep.mubr.bf16.mxu0 %v863
        %1974 = vmatmul.mubr.bf16.gmra.mrb[0].mxu0 %v815
        %v1975 = vpop.f32.mrb[0].mxu0
        %v1976 = vadd.f32 %v1815, %v1975
        %v1977 = vpop.f32.mrb[0].mxu0
        %v1978 = vpop.f32.mrb[0].mxu0
        %v1979 = vadd.f32 %v1818, %v1978
        %v1980 = vpop.f32.mrb[0].mxu0
        %1981 = vmatprep.mubr.bf16.mxu0 %v864
        %1982 = vmatmul.mubr.bf16.gmra.mrb[0].mxu0 %v816
        %v1983 = vpop.f32.mrb[0].mxu0
        %v1984 = vadd.f32 %v1823, %v1983
        %v1985 = vpop.f32.mrb[0].mxu0
        %v1986 = vpop.f32.mrb[0].mxu0
        %v1987 = vadd.f32 %v1826, %v1986
        %v1988 = vpop.f32.mrb[0].mxu0
        %1989 = vmatprep.mubr.bf16.mxu0 %v865
        %1990 = vmatmul.mubr.bf16.gmra.mrb[0].mxu0 %v817
        %v1991 = vpop.f32.mrb[0].mxu0
        %v1992 = vadd.f32 %v1831, %v1991
        %v1993 = vpop.f32.mrb[0].mxu0
        %v1994 = vpop.f32.mrb[0].mxu0
        %v1995 = vadd.f32 %v1834, %v1994
        %v1996 = vpop.f32.mrb[0].mxu0
        %1997 = vmatprep.mubr.bf16.mxu0 %v866
        %1998 = vmatmul.mubr.bf16.gmra.mrb[0].mxu0 %v818
        %v1999 = vpop.f32.mrb[0].mxu0
        %v2000 = vadd.f32 %v1839, %v1999
        %v2001 = vpop.f32.mrb[0].mxu0
        %v2002 = vpop.f32.mrb[0].mxu0
        %v2003 = vadd.f32 %v1842, %v2002
        %v2004 = vpop.f32.mrb[0].mxu0
        %2005 = vmatprep.mubr.bf16.mxu0 %v867
        %2006 = vmatmul.mubr.bf16.gmra.mrb[0].mxu0 %v819
        %v2007 = vpop.f32.mrb[0].mxu0
        %v2008 = vadd.f32 %v1847, %v2007
        %v2009 = vpop.f32.mrb[0].mxu0
        %v2010 = vpop.f32.mrb[0].mxu0
        %v2011 = vadd.f32 %v1850, %v2010
        %v2012 = vpop.f32.mrb[0].mxu0
        %2013 = vdwg.mxu0
        %2014 = vmatprep.subr.bf16.mxu0 0
        %2015 = vmatpush1.bf16.msra.mxu0 %v1580
        %2016 = vmatprep.subr.bf16.mxu0 0
        %2017 = vmatpush1.bf16.msra.mxu0 %v1581
        %2018 = vmatprep.subr.bf16.mxu0 0
        %2019 = vmatpush1.bf16.msra.mxu0 %v1582
        %2020 = vmatprep.subr.bf16.mxu0 0
        %2021 = vmatpush1.bf16.msra.mxu0 %v1583
        %2022 = vmatprep.subr.bf16.mxu0 0
        %2023 = vmatpush1.bf16.msra.mxu0 %v1584
        %2024 = vmatprep.subr.bf16.mxu0 0
        %2025 = vmatpush1.bf16.msra.mxu0 %v1585
        %2026 = vmatprep.subr.bf16.mxu0 0
        %2027 = vmatpush1.bf16.msra.mxu0 %v1586
        %2028 = vmatprep.subr.bf16.mxu0 0
        %2029 = vmatpush1.bf16.msra.mxu0 %v1587
        %2030 = vmatprep.subr.bf16.mxu0 0
        %2031 = vmatpush1.bf16.msra.mxu0 %v1588
        %2032 = vmatprep.subr.bf16.mxu0 0
        %2033 = vmatpush1.bf16.msra.mxu0 %v1589
        %2034 = vmatprep.subr.bf16.mxu0 0
        %2035 = vmatpush1.bf16.msra.mxu0 %v1590
        %2036 = vmatprep.subr.bf16.mxu0 0
        %2037 = vmatpush1.bf16.msra.mxu0 %v1591
        %2038 = vmatprep.subr.bf16.mxu0 0
        %2039 = vmatpush1.bf16.msra.mxu0 %v1592
        %2040 = vmatprep.subr.bf16.mxu0 0
        %2041 = vmatpush1.bf16.msra.mxu0 %v1593
        %2042 = vmatprep.subr.bf16.mxu0 0
        %2043 = vmatpush1.bf16.msra.mxu0 %v1594
        %2044 = vmatprep.subr.bf16.mxu0 0
        %2045 = vmatpush1.bf16.msra.mxu0 %v1595
        %2046 = vmatprep.mubr.bf16.mxu0 %v948
        %2047 = vmatmul.mubr.bf16.gmra.mrb[0].mxu0 %v900
        %v2048 = vpop.f32.mrb[0].mxu0
        %v2049 = vadd.f32 %v1888, %v2048
        %v2050 = vpop.f32.mrb[0].mxu0
        %v2051 = vpop.f32.mrb[0].mxu0
        %v2052 = vadd.f32 %v1891, %v2051
        %v2053 = vpop.f32.mrb[0].mxu0
        %2054 = vmatprep.mubr.bf16.mxu0 %v949
        %2055 = vmatmul.mubr.bf16.gmra.mrb[0].mxu0 %v901
        %v2056 = vpop.f32.mrb[0].mxu0
        %v2057 = vadd.f32 %v1896, %v2056
        %v2058 = vpop.f32.mrb[0].mxu0
        %v2059 = vpop.f32.mrb[0].mxu0
        %v2060 = vadd.f32 %v1899, %v2059
        %v2061 = vpop.f32.mrb[0].mxu0
        %2062 = vmatprep.mubr.bf16.mxu0 %v950
        %2063 = vmatmul.mubr.bf16.gmra.mrb[0].mxu0 %v902
        %v2064 = vpop.f32.mrb[0].mxu0
        %v2065 = vadd.f32 %v1904, %v2064
        %v2066 = vpop.f32.mrb[0].mxu0
        %v2067 = vpop.f32.mrb[0].mxu0
        %v2068 = vadd.f32 %v1907, %v2067
        %v2069 = vpop.f32.mrb[0].mxu0
        %2070 = vmatprep.mubr.bf16.mxu0 %v951
        %2071 = vmatmul.mubr.bf16.gmra.mrb[0].mxu0 %v903
        %v2072 = vpop.f32.mrb[0].mxu0
        %v2073 = vadd.f32 %v1912, %v2072
        %v2074 = vpop.f32.mrb[0].mxu0
        %v2075 = vpop.f32.mrb[0].mxu0
        %v2076 = vadd.f32 %v1915, %v2075
        %v2077 = vpop.f32.mrb[0].mxu0
        %2078 = vmatprep.mubr.bf16.mxu0 %v952
        %2079 = vmatmul.mubr.bf16.gmra.mrb[0].mxu0 %v904
        %v2080 = vpop.f32.mrb[0].mxu0
        %v2081 = vadd.f32 %v1920, %v2080
        %v2082 = vpop.f32.mrb[0].mxu0
        %v2083 = vpop.f32.mrb[0].mxu0
        %v2084 = vadd.f32 %v1923, %v2083
        %v2085 = vpop.f32.mrb[0].mxu0
        %2086 = vmatprep.mubr.bf16.mxu0 %v953
        %2087 = vmatmul.mubr.bf16.gmra.mrb[0].mxu0 %v905
        %v2088 = vpop.f32.mrb[0].mxu0
        %v2089 = vadd.f32 %v1928, %v2088
        %v2090 = vpop.f32.mrb[0].mxu0
        %v2091 = vpop.f32.mrb[0].mxu0
        %v2092 = vadd.f32 %v1931, %v2091
        %v2093 = vpop.f32.mrb[0].mxu0
        %2094 = vmatprep.mubr.bf16.mxu0 %v954
        %2095 = vmatmul.mubr.bf16.gmra.mrb[0].mxu0 %v906
        %v2096 = vpop.f32.mrb[0].mxu0
        %v2097 = vadd.f32 %v1936, %v2096
        %v2098 = vpop.f32.mrb[0].mxu0
        %v2099 = vpop.f32.mrb[0].mxu0
        %v2100 = vadd.f32 %v1939, %v2099
        %v2101 = vpop.f32.mrb[0].mxu0
        %2102 = vmatprep.mubr.bf16.mxu0 %v955
        %2103 = vmatmul.mubr.bf16.gmra.mrb[0].mxu0 %v907
        %v2104 = vpop.f32.mrb[0].mxu0
        %v2105 = vadd.f32 %v1944, %v2104
        %v2106 = vpop.f32.mrb[0].mxu0
        %v2107 = vpop.f32.mrb[0].mxu0
        %v2108 = vadd.f32 %v1947, %v2107
        %v2109 = vpop.f32.mrb[0].mxu0
        %2110 = vmatprep.mubr.bf16.mxu0 %v956
        %2111 = vmatmul.mubr.bf16.gmra.mrb[0].mxu0 %v908
        %v2112 = vpop.f32.mrb[0].mxu0
        %v2113 = vadd.f32 %v1952, %v2112
        %v2114 = vpop.f32.mrb[0].mxu0
        %v2115 = vpop.f32.mrb[0].mxu0
        %v2116 = vadd.f32 %v1955, %v2115
        %v2117 = vpop.f32.mrb[0].mxu0
        %2118 = vmatprep.mubr.bf16.mxu0 %v957
        %2119 = vmatmul.mubr.bf16.gmra.mrb[0].mxu0 %v909
        %v2120 = vpop.f32.mrb[0].mxu0
        %v2121 = vadd.f32 %v1960, %v2120
        %v2122 = vpop.f32.mrb[0].mxu0
        %v2123 = vpop.f32.mrb[0].mxu0
        %v2124 = vadd.f32 %v1963, %v2123
        %v2125 = vpop.f32.mrb[0].mxu0
        %2126 = vmatprep.mubr.bf16.mxu0 %v958
        %2127 = vmatmul.mubr.bf16.gmra.mrb[0].mxu0 %v910
        %v2128 = vpop.f32.mrb[0].mxu0
        %v2129 = vadd.f32 %v1968, %v2128
        %v2130 = vpop.f32.mrb[0].mxu0
        %v2131 = vpop.f32.mrb[0].mxu0
        %v2132 = vadd.f32 %v1971, %v2131
        %v2133 = vpop.f32.mrb[0].mxu0
        %2134 = vmatprep.mubr.bf16.mxu0 %v959
        %2135 = vmatmul.mubr.bf16.gmra.mrb[0].mxu0 %v911
        %v2136 = vpop.f32.mrb[0].mxu0
        %v2137 = vadd.f32 %v1976, %v2136
        %v2138 = vpop.f32.mrb[0].mxu0
        %v2139 = vpop.f32.mrb[0].mxu0
        %v2140 = vadd.f32 %v1979, %v2139
        %v2141 = vpop.f32.mrb[0].mxu0
        %2142 = vmatprep.mubr.bf16.mxu0 %v960
        %2143 = vmatmul.mubr.bf16.gmra.mrb[0].mxu0 %v912
        %v2144 = vpop.f32.mrb[0].mxu0
        %v2145 = vadd.f32 %v1984, %v2144
        %v2146 = vpop.f32.mrb[0].mxu0
        %v2147 = vpop.f32.mrb[0].mxu0
        %v2148 = vadd.f32 %v1987, %v2147
        %v2149 = vpop.f32.mrb[0].mxu0
        %2150 = vmatprep.mubr.bf16.mxu0 %v961
        %2151 = vmatmul.mubr.bf16.gmra.mrb[0].mxu0 %v913
        %v2152 = vpop.f32.mrb[0].mxu0
        %v2153 = vadd.f32 %v1992, %v2152
        %v2154 = vpop.f32.mrb[0].mxu0
        %v2155 = vpop.f32.mrb[0].mxu0
        %v2156 = vadd.f32 %v1995, %v2155
        %v2157 = vpop.f32.mrb[0].mxu0
        %2158 = vmatprep.mubr.bf16.mxu0 %v962
        %2159 = vmatmul.mubr.bf16.gmra.mrb[0].mxu0 %v914
        %v2160 = vpop.f32.mrb[0].mxu0
        %v2161 = vadd.f32 %v2000, %v2160
        %v2162 = vpop.f32.mrb[0].mxu0
        %v2163 = vpop.f32.mrb[0].mxu0
        %v2164 = vadd.f32 %v2003, %v2163
        %v2165 = vpop.f32.mrb[0].mxu0
        %2166 = vmatprep.mubr.bf16.mxu0 %v963
        %2167 = vmatmul.mubr.bf16.gmra.mrb[0].mxu0 %v915
        %v2168 = vpop.f32.mrb[0].mxu0
        %v2169 = vadd.f32 %v2008, %v2168
        %v2170 = vpop.f32.mrb[0].mxu0
        %v2171 = vpop.f32.mrb[0].mxu0
        %v2172 = vadd.f32 %v2011, %v2171
        %v2173 = vpop.f32.mrb[0].mxu0
        %2174 = vdwg.mxu0
        %2175 = vmatprep.subr.bf16.mxu0 0
        %2176 = vmatpush1.bf16.msra.mxu0 %v1596
        %2177 = vmatprep.subr.bf16.mxu0 0
        %2178 = vmatpush1.bf16.msra.mxu0 %v1597
        %2179 = vmatprep.subr.bf16.mxu0 0
        %2180 = vmatpush1.bf16.msra.mxu0 %v1598
        %2181 = vmatprep.subr.bf16.mxu0 0
        %2182 = vmatpush1.bf16.msra.mxu0 %v1599
        %2183 = vmatprep.subr.bf16.mxu0 0
        %2184 = vmatpush1.bf16.msra.mxu0 %v1600
        %2185 = vmatprep.subr.bf16.mxu0 0
        %2186 = vmatpush1.bf16.msra.mxu0 %v1601
        %2187 = vmatprep.subr.bf16.mxu0 0
        %2188 = vmatpush1.bf16.msra.mxu0 %v1602
        %2189 = vmatprep.subr.bf16.mxu0 0
        %2190 = vmatpush1.bf16.msra.mxu0 %v1603
        %2191 = vmatprep.subr.bf16.mxu0 0
        %2192 = vmatpush1.bf16.msra.mxu0 %v1604
        %2193 = vmatprep.subr.bf16.mxu0 0
        %2194 = vmatpush1.bf16.msra.mxu0 %v1605
        %2195 = vmatprep.subr.bf16.mxu0 0
        %2196 = vmatpush1.bf16.msra.mxu0 %v1606
        %2197 = vmatprep.subr.bf16.mxu0 0
        %2198 = vmatpush1.bf16.msra.mxu0 %v1607
        %2199 = vmatprep.subr.bf16.mxu0 0
        %2200 = vmatpush1.bf16.msra.mxu0 %v1608
        %2201 = vmatprep.subr.bf16.mxu0 0
        %2202 = vmatpush1.bf16.msra.mxu0 %v1609
        %2203 = vmatprep.subr.bf16.mxu0 0
        %2204 = vmatpush1.bf16.msra.mxu0 %v1610
        %2205 = vmatprep.subr.bf16.mxu0 0
        %2206 = vmatpush1.bf16.msra.mxu0 %v1611
        %2207 = vmatprep.mubr.bf16.mxu0 %v1045
        %2208 = vmatmul.mubr.bf16.gmra.mrb[0].mxu0 %v997
        %v2209 = vpop.f32.mrb[0].mxu0
        %v2210 = vadd.f32 %v2049, %v2209
        %v2211 = vpop.f32.mrb[0].mxu0
        %v2212 = vpop.f32.mrb[0].mxu0
        %v2213 = vadd.f32 %v2052, %v2212
        %v2214 = vpop.f32.mrb[0].mxu0
        %2215 = vmatprep.mubr.bf16.mxu0 %v1046
        %2216 = vmatmul.mubr.bf16.gmra.mrb[0].mxu0 %v998
        %v2217 = vpop.f32.mrb[0].mxu0
        %v2218 = vadd.f32 %v2057, %v2217
        %v2219 = vpop.f32.mrb[0].mxu0
        %v2220 = vpop.f32.mrb[0].mxu0
        %v2221 = vadd.f32 %v2060, %v2220
        %v2222 = vpop.f32.mrb[0].mxu0
        %2223 = vmatprep.mubr.bf16.mxu0 %v1047
        %2224 = vmatmul.mubr.bf16.gmra.mrb[0].mxu0 %v999
        %v2225 = vpop.f32.mrb[0].mxu0
        %v2226 = vadd.f32 %v2065, %v2225
        %v2227 = vpop.f32.mrb[0].mxu0
        %v2228 = vpop.f32.mrb[0].mxu0
        %v2229 = vadd.f32 %v2068, %v2228
        %v2230 = vpop.f32.mrb[0].mxu0
        %2231 = vmatprep.mubr.bf16.mxu0 %v1048
        %2232 = vmatmul.mubr.bf16.gmra.mrb[0].mxu0 %v1000
        %v2233 = vpop.f32.mrb[0].mxu0
        %v2234 = vadd.f32 %v2073, %v2233
        %v2235 = vpop.f32.mrb[0].mxu0
        %v2236 = vpop.f32.mrb[0].mxu0
        %v2237 = vadd.f32 %v2076, %v2236
        %v2238 = vpop.f32.mrb[0].mxu0
        %2239 = vmatprep.mubr.bf16.mxu0 %v1049
        %2240 = vmatmul.mubr.bf16.gmra.mrb[0].mxu0 %v1001
        %v2241 = vpop.f32.mrb[0].mxu0
        %v2242 = vadd.f32 %v2081, %v2241
        %v2243 = vpop.f32.mrb[0].mxu0
        %v2244 = vpop.f32.mrb[0].mxu0
        %v2245 = vadd.f32 %v2084, %v2244
        %v2246 = vpop.f32.mrb[0].mxu0
        %2247 = vmatprep.mubr.bf16.mxu0 %v1050
        %2248 = vmatmul.mubr.bf16.gmra.mrb[0].mxu0 %v1002
        %v2249 = vpop.f32.mrb[0].mxu0
        %v2250 = vadd.f32 %v2089, %v2249
        %v2251 = vpop.f32.mrb[0].mxu0
        %v2252 = vpop.f32.mrb[0].mxu0
        %v2253 = vadd.f32 %v2092, %v2252
        %v2254 = vpop.f32.mrb[0].mxu0
        %2255 = vmatprep.mubr.bf16.mxu0 %v1051
        %2256 = vmatmul.mubr.bf16.gmra.mrb[0].mxu0 %v1003
        %v2257 = vpop.f32.mrb[0].mxu0
        %v2258 = vadd.f32 %v2097, %v2257
        %v2259 = vpop.f32.mrb[0].mxu0
        %v2260 = vpop.f32.mrb[0].mxu0
        %v2261 = vadd.f32 %v2100, %v2260
        %v2262 = vpop.f32.mrb[0].mxu0
        %2263 = vmatprep.mubr.bf16.mxu0 %v1052
        %2264 = vmatmul.mubr.bf16.gmra.mrb[0].mxu0 %v1004
        %v2265 = vpop.f32.mrb[0].mxu0
        %v2266 = vadd.f32 %v2105, %v2265
        %v2267 = vpop.f32.mrb[0].mxu0
        %v2268 = vpop.f32.mrb[0].mxu0
        %v2269 = vadd.f32 %v2108, %v2268
        %v2270 = vpop.f32.mrb[0].mxu0
        %2271 = vmatprep.mubr.bf16.mxu0 %v1053
        %2272 = vmatmul.mubr.bf16.gmra.mrb[0].mxu0 %v1005
        %v2273 = vpop.f32.mrb[0].mxu0
        %v2274 = vadd.f32 %v2113, %v2273
        %v2275 = vpop.f32.mrb[0].mxu0
        %v2276 = vpop.f32.mrb[0].mxu0
        %v2277 = vadd.f32 %v2116, %v2276
        %v2278 = vpop.f32.mrb[0].mxu0
        %2279 = vmatprep.mubr.bf16.mxu0 %v1054
        %2280 = vmatmul.mubr.bf16.gmra.mrb[0].mxu0 %v1006
        %v2281 = vpop.f32.mrb[0].mxu0
        %v2282 = vadd.f32 %v2121, %v2281
        %v2283 = vpop.f32.mrb[0].mxu0
        %v2284 = vpop.f32.mrb[0].mxu0
        %v2285 = vadd.f32 %v2124, %v2284
        %v2286 = vpop.f32.mrb[0].mxu0
        %2287 = vmatprep.mubr.bf16.mxu0 %v1055
        %2288 = vmatmul.mubr.bf16.gmra.mrb[0].mxu0 %v1007
        %v2289 = vpop.f32.mrb[0].mxu0
        %v2290 = vadd.f32 %v2129, %v2289
        %v2291 = vpop.f32.mrb[0].mxu0
        %v2292 = vpop.f32.mrb[0].mxu0
        %v2293 = vadd.f32 %v2132, %v2292
        %v2294 = vpop.f32.mrb[0].mxu0
        %2295 = vmatprep.mubr.bf16.mxu0 %v1056
        %2296 = vmatmul.mubr.bf16.gmra.mrb[0].mxu0 %v1008
        %v2297 = vpop.f32.mrb[0].mxu0
        %v2298 = vadd.f32 %v2137, %v2297
        %v2299 = vpop.f32.mrb[0].mxu0
        %v2300 = vpop.f32.mrb[0].mxu0
        %v2301 = vadd.f32 %v2140, %v2300
        %v2302 = vpop.f32.mrb[0].mxu0
        %2303 = vmatprep.mubr.bf16.mxu0 %v1057
        %2304 = vmatmul.mubr.bf16.gmra.mrb[0].mxu0 %v1009
        %v2305 = vpop.f32.mrb[0].mxu0
        %v2306 = vadd.f32 %v2145, %v2305
        %v2307 = vpop.f32.mrb[0].mxu0
        %v2308 = vpop.f32.mrb[0].mxu0
        %v2309 = vadd.f32 %v2148, %v2308
        %v2310 = vpop.f32.mrb[0].mxu0
        %2311 = vmatprep.mubr.bf16.mxu0 %v1058
        %2312 = vmatmul.mubr.bf16.gmra.mrb[0].mxu0 %v1010
        %v2313 = vpop.f32.mrb[0].mxu0
        %v2314 = vadd.f32 %v2153, %v2313
        %v2315 = vpop.f32.mrb[0].mxu0
        %v2316 = vpop.f32.mrb[0].mxu0
        %v2317 = vadd.f32 %v2156, %v2316
        %v2318 = vpop.f32.mrb[0].mxu0
        %2319 = vmatprep.mubr.bf16.mxu0 %v1059
        %2320 = vmatmul.mubr.bf16.gmra.mrb[0].mxu0 %v1011
        %v2321 = vpop.f32.mrb[0].mxu0
        %v2322 = vadd.f32 %v2161, %v2321
        %v2323 = vpop.f32.mrb[0].mxu0
        %v2324 = vpop.f32.mrb[0].mxu0
        %v2325 = vadd.f32 %v2164, %v2324
        %v2326 = vpop.f32.mrb[0].mxu0
        %2327 = vmatprep.mubr.bf16.mxu0 %v1060
        %2328 = vmatmul.mubr.bf16.gmra.mrb[0].mxu0 %v1012
        %v2329 = vpop.f32.mrb[0].mxu0
        %v2330 = vadd.f32 %v2169, %v2329
        %v2331 = vpop.f32.mrb[0].mxu0
        %v2332 = vpop.f32.mrb[0].mxu0
        %v2333 = vadd.f32 %v2172, %v2332
        %v2334 = vpop.f32.mrb[0].mxu0
        %2335 = vdwg.mxu0
        %2336 = vmatprep.subr.bf16.mxu0 0
        %2337 = vmatpush1.bf16.msra.mxu0 %v1612
        %2338 = vmatprep.subr.bf16.mxu0 0
        %2339 = vmatpush1.bf16.msra.mxu0 %v1613
        %2340 = vmatprep.subr.bf16.mxu0 0
        %2341 = vmatpush1.bf16.msra.mxu0 %v1614
        %2342 = vmatprep.subr.bf16.mxu0 0
        %2343 = vmatpush1.bf16.msra.mxu0 %v1615
        %2344 = vmatprep.subr.bf16.mxu0 0
        %2345 = vmatpush1.bf16.msra.mxu0 %v1616
        %2346 = vmatprep.subr.bf16.mxu0 0
        %2347 = vmatpush1.bf16.msra.mxu0 %v1617
        %2348 = vmatprep.subr.bf16.mxu0 0
        %2349 = vmatpush1.bf16.msra.mxu0 %v1618
        %2350 = vmatprep.subr.bf16.mxu0 0
        %2351 = vmatpush1.bf16.msra.mxu0 %v1619
        %2352 = vmatprep.subr.bf16.mxu0 0
        %2353 = vmatpush1.bf16.msra.mxu0 0
        %2354 = vmatprep.subr.bf16.mxu0 0
        %2355 = vmatpush1.bf16.msra.mxu0 0
        %2356 = vmatprep.subr.bf16.mxu0 0
        %2357 = vmatpush1.bf16.msra.mxu0 0
        %2358 = vmatprep.subr.bf16.mxu0 0
        %2359 = vmatpush1.bf16.msra.mxu0 0
        %2360 = vmatprep.subr.bf16.mxu0 0
        %2361 = vmatpush1.bf16.msra.mxu0 0
        %2362 = vmatprep.subr.bf16.mxu0 0
        %2363 = vmatpush1.bf16.msra.mxu0 0
        %2364 = vmatprep.subr.bf16.mxu0 0
        %2365 = vmatpush1.bf16.msra.mxu0 0
        %2366 = vmatprep.subr.bf16.mxu0 0
        %2367 = vmatpush1.bf16.msra.mxu0 0
        %2368 = vmatprep.mubr.bf16.mxu0 0
        %2369 = vmatmul.mubr.bf16.gmra.mrb[0].mxu0 %v1093
        %v2370 = vpop.f32.mrb[0].mxu0
        %v2371 = vadd.f32 %v2210, %v2370
        %v2372 = vpop.f32.mrb[0].mxu0
        %v2373 = vpop.f32.mrb[0].mxu0
        %v2374 = vadd.f32 %v2213, %v2373
        %v2375 = vpop.f32.mrb[0].mxu0
        %2376 = vmatprep.mubr.bf16.mxu0 0
        %2377 = vmatmul.mubr.bf16.gmra.mrb[0].mxu0 %v1094
        %v2378 = vpop.f32.mrb[0].mxu0
        %v2379 = vadd.f32 %v2218, %v2378
        %v2380 = vpop.f32.mrb[0].mxu0
        %v2381 = vpop.f32.mrb[0].mxu0
        %v2382 = vadd.f32 %v2221, %v2381
        %v2383 = vpop.f32.mrb[0].mxu0
        %2384 = vmatprep.mubr.bf16.mxu0 0
        %2385 = vmatmul.mubr.bf16.gmra.mrb[0].mxu0 %v1095
        %v2386 = vpop.f32.mrb[0].mxu0
        %v2387 = vadd.f32 %v2226, %v2386
        %v2388 = vpop.f32.mrb[0].mxu0
        %v2389 = vpop.f32.mrb[0].mxu0
        %v2390 = vadd.f32 %v2229, %v2389
        %v2391 = vpop.f32.mrb[0].mxu0
        %2392 = vmatprep.mubr.bf16.mxu0 0
        %2393 = vmatmul.mubr.bf16.gmra.mrb[0].mxu0 %v1096
        %v2394 = vpop.f32.mrb[0].mxu0
        %v2395 = vadd.f32 %v2234, %v2394
        %v2396 = vpop.f32.mrb[0].mxu0
        %v2397 = vpop.f32.mrb[0].mxu0
        %v2398 = vadd.f32 %v2237, %v2397
        %v2399 = vpop.f32.mrb[0].mxu0
        %2400 = vmatprep.mubr.bf16.mxu0 0
        %2401 = vmatmul.mubr.bf16.gmra.mrb[0].mxu0 %v1097
        %v2402 = vpop.f32.mrb[0].mxu0
        %v2403 = vadd.f32 %v2242, %v2402
        %v2404 = vpop.f32.mrb[0].mxu0
        %v2405 = vpop.f32.mrb[0].mxu0
        %v2406 = vadd.f32 %v2245, %v2405
        %v2407 = vpop.f32.mrb[0].mxu0
        %2408 = vmatprep.mubr.bf16.mxu0 0
        %2409 = vmatmul.mubr.bf16.gmra.mrb[0].mxu0 %v1098
        %v2410 = vpop.f32.mrb[0].mxu0
        %v2411 = vadd.f32 %v2250, %v2410
        %v2412 = vpop.f32.mrb[0].mxu0
        %v2413 = vpop.f32.mrb[0].mxu0
        %v2414 = vadd.f32 %v2253, %v2413
        %v2415 = vpop.f32.mrb[0].mxu0
        %2416 = vmatprep.mubr.bf16.mxu0 0
        %2417 = vmatmul.mubr.bf16.gmra.mrb[0].mxu0 %v1099
        %v2418 = vpop.f32.mrb[0].mxu0
        %v2419 = vadd.f32 %v2258, %v2418
        %v2420 = vpop.f32.mrb[0].mxu0
        %v2421 = vpop.f32.mrb[0].mxu0
        %v2422 = vadd.f32 %v2261, %v2421
        %v2423 = vpop.f32.mrb[0].mxu0
        %2424 = vmatprep.mubr.bf16.mxu0 0
        %2425 = vmatmul.mubr.bf16.gmra.mrb[0].mxu0 %v1100
        %v2426 = vpop.f32.mrb[0].mxu0
        %v2427 = vadd.f32 %v2266, %v2426
        %v2428 = vpop.f32.mrb[0].mxu0
        %v2429 = vpop.f32.mrb[0].mxu0
        %v2430 = vadd.f32 %v2269, %v2429
        %v2431 = vpop.f32.mrb[0].mxu0
        %2432 = vmatprep.mubr.bf16.mxu0 0
        %2433 = vmatmul.mubr.bf16.gmra.mrb[0].mxu0 %v1101
        %v2434 = vpop.f32.mrb[0].mxu0
        %v2435 = vadd.f32 %v2274, %v2434
        %v2436 = vpop.f32.mrb[0].mxu0
        %v2437 = vpop.f32.mrb[0].mxu0
        %v2438 = vadd.f32 %v2277, %v2437
        %v2439 = vpop.f32.mrb[0].mxu0
        %2440 = vmatprep.mubr.bf16.mxu0 0
        %2441 = vmatmul.mubr.bf16.gmra.mrb[0].mxu0 %v1102
        %v2442 = vpop.f32.mrb[0].mxu0
        %v2443 = vadd.f32 %v2282, %v2442
        %v2444 = vpop.f32.mrb[0].mxu0
        %v2445 = vpop.f32.mrb[0].mxu0
        %v2446 = vadd.f32 %v2285, %v2445
        %v2447 = vpop.f32.mrb[0].mxu0
        %2448 = vmatprep.mubr.bf16.mxu0 0
        %2449 = vmatmul.mubr.bf16.gmra.mrb[0].mxu0 %v1103
        %v2450 = vpop.f32.mrb[0].mxu0
        %v2451 = vadd.f32 %v2290, %v2450
        %v2452 = vpop.f32.mrb[0].mxu0
        %v2453 = vpop.f32.mrb[0].mxu0
        %v2454 = vadd.f32 %v2293, %v2453
        %v2455 = vpop.f32.mrb[0].mxu0
        %2456 = vmatprep.mubr.bf16.mxu0 0
        %2457 = vmatmul.mubr.bf16.gmra.mrb[0].mxu0 %v1104
        %v2458 = vpop.f32.mrb[0].mxu0
        %v2459 = vadd.f32 %v2298, %v2458
        %v2460 = vpop.f32.mrb[0].mxu0
        %v2461 = vpop.f32.mrb[0].mxu0
        %v2462 = vadd.f32 %v2301, %v2461
        %v2463 = vpop.f32.mrb[0].mxu0
        %2464 = vmatprep.mubr.bf16.mxu0 0
        %2465 = vmatmul.mubr.bf16.gmra.mrb[0].mxu0 %v1105
        %v2466 = vpop.f32.mrb[0].mxu0
        %v2467 = vadd.f32 %v2306, %v2466
        %v2468 = vpop.f32.mrb[0].mxu0
        %v2469 = vpop.f32.mrb[0].mxu0
        %v2470 = vadd.f32 %v2309, %v2469
        %v2471 = vpop.f32.mrb[0].mxu0
        %2472 = vmatprep.mubr.bf16.mxu0 0
        %2473 = vmatmul.mubr.bf16.gmra.mrb[0].mxu0 %v1106
        %v2474 = vpop.f32.mrb[0].mxu0
        %v2475 = vadd.f32 %v2314, %v2474
        %v2476 = vpop.f32.mrb[0].mxu0
        %v2477 = vpop.f32.mrb[0].mxu0
        %v2478 = vadd.f32 %v2317, %v2477
        %v2479 = vpop.f32.mrb[0].mxu0
        %2480 = vmatprep.mubr.bf16.mxu0 0
        %2481 = vmatmul.mubr.bf16.gmra.mrb[0].mxu0 %v1107
        %v2482 = vpop.f32.mrb[0].mxu0
        %v2483 = vadd.f32 %v2322, %v2482
        %v2484 = vpop.f32.mrb[0].mxu0
        %v2485 = vpop.f32.mrb[0].mxu0
        %v2486 = vadd.f32 %v2325, %v2485
        %v2487 = vpop.f32.mrb[0].mxu0
        %2488 = vmatprep.mubr.bf16.mxu0 0
        %2489 = vmatmul.mubr.bf16.gmra.mrb[0].mxu0 %v1108
        %v2490 = vpop.f32.mrb[0].mxu0
        %v2491 = vadd.f32 %v2330, %v2490
        %v2492 = vpop.f32.mrb[0].mxu0
        %v2493 = vpop.f32.mrb[0].mxu0
        %v2494 = vadd.f32 %v2333, %v2493
        %v2495 = vpop.f32.mrb[0].mxu0
        %2496 = vdwg.mxu0
        %v2497 = vadd.f32 %v2371, %v331
        %v2498 = vadd.f32 %v2374, %v332
        %v2499 = vadd.f32 %v2379, %v333
        %v2500 = vadd.f32 %v2382, %v334
        %v2501 = vadd.f32 %v2387, %v335
        %v2502 = vadd.f32 %v2390, %v336
        %v2503 = vadd.f32 %v2395, %v337
        %v2504 = vadd.f32 %v2398, %v338
        %v2505 = vadd.f32 %v2403, %v339
        %v2506 = vadd.f32 %v2406, %v340
        %v2507 = vadd.f32 %v2411, %v341
        %v2508 = vadd.f32 %v2414, %v342
        %v2509 = vadd.f32 %v2419, %v343
        %v2510 = vadd.f32 %v2422, %v344
        %v2511 = vadd.f32 %v2427, %v345
        %v2512 = vadd.f32 %v2430, %v346
        %v2513 = vadd.f32 %v2435, %v347
        %v2514 = vadd.f32 %v2438, %v348
        %v2515 = vadd.f32 %v2443, %v349
        %v2516 = vadd.f32 %v2446, %v350
        %v2517 = vadd.f32 %v2451, %v351
        %v2518 = vadd.f32 %v2454, %v352
        %v2519 = vadd.f32 %v2459, %v353
        %v2520 = vadd.f32 %v2462, %v354
        %v2521 = vadd.f32 %v2467, %v355
        %v2522 = vadd.f32 %v2470, %v356
        %v2523 = vadd.f32 %v2475, %v357
        %v2524 = vadd.f32 %v2478, %v358
        %v2525 = vadd.f32 %v2483, %v359
        %v2526 = vadd.f32 %v2486, %v360
        %v2527 = vadd.f32 %v2491, %v361
        %v2528 = vadd.f32 %v2494, %v362
        %v2529 = vmax.f32 %v2497, 0.0
        %v2530 = vmax.f32 %v2498, 0.0
        %v2531 = vmax.f32 %v2499, 0.0
        %v2532 = vmax.f32 %v2500, 0.0
        %v2533 = vmax.f32 %v2501, 0.0
        %v2534 = vmax.f32 %v2502, 0.0
        %v2535 = vmax.f32 %v2503, 0.0
        %v2536 = vmax.f32 %v2504, 0.0
        %v2537 = vmax.f32 %v2505, 0.0
        %v2538 = vmax.f32 %v2506, 0.0
        %v2539 = vmax.f32 %v2507, 0.0
        %v2540 = vmax.f32 %v2508, 0.0
        %v2541 = vmax.f32 %v2509, 0.0
        %v2542 = vmax.f32 %v2510, 0.0
        %v2543 = vmax.f32 %v2511, 0.0
        %v2544 = vmax.f32 %v2512, 0.0
        %v2545 = vmax.f32 %v2513, 0.0
        %v2546 = vmax.f32 %v2514, 0.0
        %v2547 = vmax.f32 %v2515, 0.0
        %v2548 = vmax.f32 %v2516, 0.0
        %v2549 = vmax.f32 %v2517, 0.0
        %v2550 = vmax.f32 %v2518, 0.0
        %v2551 = vmax.f32 %v2519, 0.0
        %v2552 = vmax.f32 %v2520, 0.0
        %v2553 = vmax.f32 %v2521, 0.0
        %v2554 = vmax.f32 %v2522, 0.0
        %v2555 = vmax.f32 %v2523, 0.0
        %v2556 = vmax.f32 %v2524, 0.0
        %v2557 = vmax.f32 %v2525, 0.0
        %v2558 = vmax.f32 %v2526, 0.0
        %v2559 = vmax.f32 %v2527, 0.0
        %v2560 = vmax.f32 %v2528, 0.0
        %2561 = vst [vmem:[%s271] sm:$0xff] %v2529
        %2562 = vst [vmem:[%s271 + $0x8] sm:$0xff] %v2530
        %2563 = vst [vmem:[%s271 + $0x10] sm:$0xff] %v2531
        %2564 = vst [vmem:[%s271 + $0x18] sm:$0xff] %v2532
        %2565 = vst [vmem:[%s271 + $0x20] sm:$0xff] %v2533
        %2566 = vst [vmem:[%s271 + $0x28] sm:$0xff] %v2534
        %2567 = vst [vmem:[%s271 + $0x30] sm:$0xff] %v2535
        %2568 = vst [vmem:[%s271 + $0x38] sm:$0xff] %v2536
        %2569 = vst [vmem:[%s271 + $0x40] sm:$0xff] %v2537
        %2570 = vst [vmem:[%s271 + $0x48] sm:$0xff] %v2538
        %2571 = vst [vmem:[%s271 + $0x50] sm:$0xff] %v2539
        %2572 = vst [vmem:[%s271 + $0x58] sm:$0xff] %v2540
        %2573 = vst [vmem:[%s271 + $0x60] sm:$0xff] %v2541
        %2574 = vst [vmem:[%s271 + $0x68] sm:$0xff] %v2542
        %2575 = vst [vmem:[%s271 + $0x70] sm:$0xff] %v2543
        %2576 = vst [vmem:[%s271 + $0x78] sm:$0xff] %v2544
        %2577 = vst [vmem:[%s271 + $0x80] sm:$0xff] %v2545
        %2578 = vst [vmem:[%s271 + $0x88] sm:$0xff] %v2546
        %2579 = vst [vmem:[%s271 + $0x90] sm:$0xff] %v2547
        %2580 = vst [vmem:[%s271 + $0x98] sm:$0xff] %v2548
        %2581 = vst [vmem:[%s271 + $0xa0] sm:$0xff] %v2549
        %2582 = vst [vmem:[%s271 + $0xa8] sm:$0xff] %v2550
        %2583 = vst [vmem:[%s271 + $0xb0] sm:$0xff] %v2551
        %2584 = vst [vmem:[%s271 + $0xb8] sm:$0xff] %v2552
        %2585 = vst [vmem:[%s271 + $0xc0] sm:$0xff] %v2553
        %2586 = vst [vmem:[%s271 + $0xc8] sm:$0xff] %v2554
        %2587 = vst [vmem:[%s271 + $0xd0] sm:$0xff] %v2555
        %2588 = vst [vmem:[%s271 + $0xd8] sm:$0xff] %v2556
        %2589 = vst [vmem:[%s271 + $0xe0] sm:$0xff] %v2557
        %2590 = vst [vmem:[%s271 + $0xe8] sm:$0xff] %v2558
        %2591 = vst [vmem:[%s271 + $0xf0] sm:$0xff] %v2559
        %2592 = vst [vmem:[%s271 + $0xf8] sm:$0xff] %v2560
        %s2593 = sand.u32 %s141, 1
        %s2594 = scalar_lea.sflag [#allocation5], %s2593
        %s2595 = sand.u32 %s141, 1
        %s2596 = smul.addr %s2595, 256
        %s2597 = scalar_lea.vmem [#allocation9], %s2596
        // Predicated region
        $region57: #{tpu_custom_call.1} parent=39 // pred_check
          %p2598 = pneg %p151
        $region58: #{tpu_custom_call.1} parent=39 // pred_check_branch
          %2600 = sbr.rel (%p2598) target = $region60
        $region59: #{tpu_custom_call.1} parent=39 // pred_region
          %s2602 = ssub.s32 4096, 4096
          %2603 = vsyncadd %s2594, %s2602
          %s2604 = smul.addr %s23, 32
          %s2605 = smul.addr %s2604, 128
          %s2606 = scalar_lea.hbm %s5, %s2605
          %s2607 = sshll.u32 %s2597, 4
          %s2608 = int_to_ptr.vmem [resolvable:$true] %s2607
          %2613 = dma.vmem_to_hbm [thread:$0]  %s2608, 4096, %s2606, %s2594, 128, 128, 8
        $region60: #{tpu_custom_call.1} parent=39 // pred_fallthru
          _
      $region40: #{tpu_custom_call.1} parent=5 // pred_fallthru
        _
      %p2614 = scmp.le.s32.totalorder 2, %s18
      // Predicated region
      $region61: #{tpu_custom_call.1} parent=5 // pred_check
        %p2615 = pneg %p2614
      $region62: #{tpu_custom_call.1} parent=5 // pred_check_branch
        %2617 = sbr.rel (%p2615) target = $region64
      $region63: #{tpu_custom_call.1} parent=5 // pred_region
        %s2618 = ssub.s32 %s18, 2
        // Predicated region
        $region65: #{tpu_custom_call.1} parent=63 // pred_check
          %p2619 = pneg %p157
        $region66: #{tpu_custom_call.1} parent=63 // pred_check_branch
          %2621 = sbr.rel (%p2619) target = $region68
        $region67: #{tpu_custom_call.1} parent=63 // pred_region
          %s2622 = sand.u32 %s142, 1
          %s2623 = scalar_lea.sflag [#allocation5], %s2622
          %s2624 = sand.u32 %s142, 1
          %s2625 = smul.addr %s2624, 256
          %s2626 = scalar_lea.vmem [#allocation9], %s2625
          %2627 = dma.done %s2623, 4096
        $region68: #{tpu_custom_call.1} parent=63 // pred_fallthru
          _
      $region64: #{tpu_custom_call.1} parent=5 // pred_fallthru
        _
    $region6: #{tpu_custom_call.1} parent=1 // loop_footer
      %s22 = sadd.s32 1, %s18
    $region7: #{tpu_custom_call.1} parent=1 // loop_footer_branch
      %17 = sbr.rel target = $region3
    $region8: #{tpu_custom_call.1} parent=1 // loop_exit
      _
    %2628 = vsyncpa [#allocation4], 1
    %s2629 = scalar_lea.sflag [#allocation4], 1
    %2630 = vsyncpa %s2629, 1
    %2631 = vsyncpa [#allocation7], 1
    %2632 = vsyncpa [#allocation5], 1
    %s2633 = scalar_lea.sflag [#allocation5], 1
    %2634 = vsyncpa %s2633, 1

</llo_original>
